<compile_context>
chip_gen: v6e
topology: v6e:2x2x1
jax: 0.10.0
libtpu: 0.0.40
codegen_flags: <defaults>
</compile_context>

<pallas_src>
import math

import jax
import jax.numpy as jnp
from jax.experimental import pallas as pl
from jax.experimental.pallas import tpu as pltpu

TEMPERATURE = 0.07
BASE_TEMPERATURE = 0.07

NEG_MASK = -1e30   # "minus infinity" for masked logits (exp -> 0, stays finite)
M_INIT = -1e9      # finite init for the running max (avoids inf-inf NaNs)
VMEM_LIMIT_BYTES = 32 * 1024 * 1024  # safe on v5e/v6e (128 MiB) and v7x (64 MiB)


# ----------------------------------------------------------------------------
# Kernel 1: encoders + projections, bf16 MXU matmuls, f32 accumulation.
# ----------------------------------------------------------------------------
def supcon_encoder_kernel(
    x1_ref, x2_ref,
    e1w0, e1b0, e1w1, e1b1, e1w2, e1b2,
    e2w0, e2b0, e2w1, e2b1, e2w2, e2b2,
    p1w0, p1b0, p1w1, p1b1,
    p2w0, p2b0, p2w1, p2b1,
    feat_ref,
):
    inv_sqrt_t = 1.0 / math.sqrt(TEMPERATURE)   # fold 1/T into features

    def linear(x_bf16, w_ref, b_ref):
        return jnp.dot(x_bf16, w_ref[...],
                       preferred_element_type=jnp.float32) + b_ref[...]

    def relu_bf16(v):
        return jnp.maximum(v, 0.0).astype(jnp.bfloat16)

    def branch(x, ew0, eb0, ew1, eb1, ew2, eb2, pw0, pb0, pw1, pb1):
        # encoder: 2 x [Linear -> ReLU] + Linear (no activation)
        h = relu_bf16(linear(x, ew0, eb0))
        h = relu_bf16(linear(h, ew1, eb1))
        emb = linear(h, ew2, eb2)                                   # f32
        # projection: 1 x [Linear -> ReLU] + Linear (no activation)
        ph = relu_bf16(linear(emb.astype(jnp.bfloat16), pw0, pb0))
        z = linear(ph, pw1, pb1)                                    # f32
        return (z * inv_sqrt_t).astype(jnp.bfloat16)

    feat_ref[0] = branch(x1_ref[...], e1w0, e1b0, e1w1, e1b1, e1w2, e1b2,
                         p1w0, p1b0, p1w1, p1b1)
    feat_ref[1] = branch(x2_ref[...], e2w0, e2b0, e2w1, e2b1, e2w2, e2b2,
                         p2w0, p2b0, p2w1, p2b1)


# ----------------------------------------------------------------------------
# Kernel 2: flash-style streaming SupConLoss over (anchor blocks, contrast blocks).
# ----------------------------------------------------------------------------
def supcon_loss_kernel(q_ref, kt_ref, yq_ref, yk_ref, vq_ref, vk_ref,
                       out_ref, m_sc, l_sc, sp_sc, cp_sc):
    tq = q_ref.shape[0]
    tk = kt_ref.shape[1]
    i = pl.program_id(0)
    j = pl.program_id(1)

    @pl.when(j == 0)
    def _():
        m_sc[...] = jnp.full((tq, 1), M_INIT, jnp.float32)
        l_sc[...] = jnp.zeros((tq, 1), jnp.float32)
        sp_sc[...] = jnp.zeros((tq, 1), jnp.float32)
        cp_sc[...] = jnp.zeros((tq, 1), jnp.float32)

    # Similarity block; 1/T is already folded into the (bf16) features.
    sim = jnp.dot(q_ref[...], kt_ref[...], preferred_element_type=jnp.float32)

    rowg = i * tq + jax.lax.broadcasted_iota(jnp.int32, (tq, tk), 0)
    colg = j * tk + jax.lax.broadcasted_iota(jnp.int32, (tq, tk), 1)
    diag = rowg == colg
    kvalid = vk_ref[...] > 0.5                        # (1, tk) contrast validity

    # Remove self-contrast and padded contrast columns from max/denominator by
    # pushing them to a huge negative (exp -> 0); no separate mask multiply.
    sim = jnp.where(jnp.logical_or(diag, jnp.logical_not(kvalid)), NEG_MASK, sim)

    # Positive mask: same label, not self, not a padded column (int32 compare).
    pos = jnp.logical_and(yq_ref[...] == yk_ref[...], jnp.logical_not(diag))
    pos = jnp.logical_and(pos, kvalid).astype(jnp.float32)

    # Online softmax-denominator + positive-logit accumulators.
    m_new = jnp.maximum(m_sc[...], jnp.max(sim, axis=1, keepdims=True))
    alpha = jnp.exp(m_sc[...] - m_new)
    l_sc[...] = alpha * l_sc[...] + jnp.sum(jnp.exp(sim - m_new), axis=1,
                                            keepdims=True)
    sp_sc[...] = sp_sc[...] + jnp.sum(pos * sim, axis=1, keepdims=True)
    cp_sc[...] = cp_sc[...] + jnp.sum(pos, axis=1, keepdims=True)
    m_sc[...] = m_new

    @pl.when(j == pl.num_programs(1) - 1)
    def _():
        cp = cp_sc[...]
        cp_safe = jnp.maximum(cp, 1.0)                # guard (padded anchors)
        log_denom = m_sc[...] + jnp.log(l_sc[...])
        # mean_j[pos] (logit_ij - log sum_k exp(logit_ik))
        mean_log_prob_pos = (sp_sc[...] - cp * log_denom) * pl.reciprocal(
            cp_safe, approx=True)
        per_anchor = -(TEMPERATURE / BASE_TEMPERATURE) * mean_log_prob_pos
        out_ref[...] = per_anchor * vq_ref[...]       # zero padded anchor rows


# ----------------------------------------------------------------------------
# Wrapper: padding to lane-dense shapes, bf16 casts, two pallas_calls.
# ----------------------------------------------------------------------------
def _round_up(x, m):
    return ((x + m - 1) // m) * m


def _pick_tile(total):
    for cand in (512, 256, 128, 64, 32, 16):
        if total % cand == 0 and cand <= total:
            return cand
    return total


def _full_spec(shape):
    return pl.BlockSpec(shape, lambda i: (0,) * len(shape))


def _supcon_forward(x1, x2, y, params):
    b, x1_dim = x1.shape
    _, x2_dim = x2.shape
    hidden = params[0].shape[1]
    embed = params[4].shape[1]

    # ---- lane-dense padded dims ----
    x1p_dim = _round_up(x1_dim, 128)
    x2p_dim = _round_up(x2_dim, 128)
    hp = _round_up(hidden, 128)
    ep = _round_up(embed, 128)

    bpad = _round_up(b, 16)                 # bf16 sublane granularity
    n_pad = 2 * bpad
    tq = min(128, n_pad)
    if n_pad % tq != 0:
        bpad = _round_up(bpad, tq // 2)
        n_pad = 2 * bpad
    tk = tq
    tb = _pick_tile(bpad)

    # ---- pad + cast weights (bf16) and biases (f32) ----
    lin_shapes = [
        (x1p_dim, hp), (hp, hp), (hp, ep),   # encoder_x1
        (x2p_dim, hp), (hp, hp), (hp, ep),   # encoder_x2
        (ep, ep), (ep, ep),                  # projection_x1
        (ep, ep), (ep, ep),                  # projection_x2
    ]
    padded_params = []
    for idx, (ip, op) in enumerate(lin_shapes):
        w = params[2 * idx]
        bb = params[2 * idx + 1]
        wp = jnp.pad(w, ((0, ip - w.shape[0]), (0, op - w.shape[1])))
        bp = jnp.pad(bb, ((0, 0), (0, op - bb.shape[1])))
        padded_params.append(wp.astype(jnp.bfloat16))
        padded_params.append(bp.astype(jnp.float32))

    # ---- pad + cast inputs ----
    x1p = jnp.pad(x1, ((0, bpad - b), (0, x1p_dim - x1_dim))).astype(jnp.bfloat16)
    x2p = jnp.pad(x2, ((0, bpad - b), (0, x2p_dim - x2_dim))).astype(jnp.bfloat16)

    # ---- labels / validity for the 2*bpad contrast rows (view-major order) ----
    labels = y[:, 0].astype(jnp.int32)                       # y.T[0]
    lab_full = jnp.zeros((n_pad,), jnp.int32)
    lab_full = lab_full.at[0:b].set(labels).at[bpad:bpad + b].set(labels)
    valid_full = jnp.zeros((n_pad,), jnp.float32)
    valid_full = valid_full.at[0:b].set(1.0).at[bpad:bpad + b].set(1.0)
    y_col = lab_full.reshape(n_pad, 1)
    y_row = lab_full.reshape(1, n_pad)
    v_col = valid_full.reshape(n_pad, 1)
    v_row = valid_full.reshape(1, n_pad)

    # ---- kernel 1: encoders + projections ----
    enc_in_specs = [
        pl.BlockSpec((tb, x1p_dim), lambda i: (i, 0)),
        pl.BlockSpec((tb, x2p_dim), lambda i: (i, 0)),
    ] + [_full_spec(p.shape) for p in padded_params]

    feat = pl.pallas_call(
        supcon_encoder_kernel,
        out_shape=jax.ShapeDtypeStruct((2, bpad, ep), jnp.bfloat16),
        grid_spec=pltpu.PrefetchScalarGridSpec(
            num_scalar_prefetch=0,
            grid=(bpad // tb,),
            in_specs=enc_in_specs,
            out_specs=pl.BlockSpec((2, tb, ep), lambda i: (0, i, 0)),
        ),
        compiler_params=pltpu.CompilerParams(
            dimension_semantics=("parallel",),
            vmem_limit_bytes=VMEM_LIMIT_BYTES),
    )(x1p, x2p, *padded_params)

    # (2, bpad, ep) -> (2*bpad, ep) == concat([z1, z2], axis=0); free reshape.
    feat2d = feat.reshape(n_pad, ep)
    feat_t = feat2d.T                                        # (ep, n_pad) bf16

    # ---- kernel 2: streaming SupConLoss ----
    per_anchor = pl.pallas_call(
        supcon_loss_kernel,
        out_shape=jax.ShapeDtypeStruct((n_pad, 1), jnp.float32),
        grid_spec=pltpu.PrefetchScalarGridSpec(
            num_scalar_prefetch=0,
            grid=(n_pad // tq, n_pad // tk),
            in_specs=[
                pl.BlockSpec((tq, ep), lambda i, j: (i, 0)),   # anchors
                pl.BlockSpec((ep, tk), lambda i, j: (0, j)),   # contrast (pre-T)
                pl.BlockSpec((tq, 1), lambda i, j: (i, 0)),    # anchor labels
                pl.BlockSpec((1, tk), lambda i, j: (0, j)),    # contrast labels
                pl.BlockSpec((tq, 1), lambda i, j: (i, 0)),    # anchor validity
                pl.BlockSpec((1, tk), lambda i, j: (0, j)),    # contrast validity
            ],
            out_specs=pl.BlockSpec((tq, 1), lambda i, j: (i, 0)),
            scratch_shapes=[pltpu.VMEM((tq, 1), jnp.float32)] * 4,
        ),
        compiler_params=pltpu.CompilerParams(
            dimension_semantics=("parallel", "arbitrary"),
            vmem_limit_bytes=VMEM_LIMIT_BYTES),
    )(feat2d, feat_t, y_col, y_row, v_col, v_row)

    # Mean over the 2B real anchors (padded rows already zeroed in-kernel).
    return jnp.sum(per_anchor) / float(2 * b)


supcon_forward = jax.jit(_supcon_forward)


# ----------------------------------------------------------------------------
# Parameter init (PyTorch nn.Linear default), unpadded / f32.
# ----------------------------------------------------------------------------
def init_linear(key, fan_in, fan_out):
    kw, kb = jax.random.split(key)
    bound = 1.0 / math.sqrt(fan_in)
    w = jax.random.uniform(kw, (fan_in, fan_out), jnp.float32, -bound, bound)
    b = jax.random.uniform(kb, (1, fan_out), jnp.float32, -bound, bound)
    return w, b


def make_params(key, x1_dim, x2_dim, hidden_dim, embed_dim):
    keys = jax.random.split(key, 10)
    params = []
    # encoder_x1: x1_dim -> hidden -> hidden -> embed
    params += init_linear(keys[0], x1_dim, hidden_dim)
    params += init_linear(keys[1], hidden_dim, hidden_dim)
    params += init_linear(keys[2], hidden_dim, embed_dim)
    # encoder_x2
    params += init_linear(keys[3], x2_dim, hidden_dim)
    params += init_linear(keys[4], hidden_dim, hidden_dim)
    params += init_linear(keys[5], hidden_dim, embed_dim)
    # projection_x1: embed -> embed -> embed (layers=1)
    params += init_linear(keys[6], embed_dim, embed_dim)
    params += init_linear(keys[7], embed_dim, embed_dim)
    # projection_x2
    params += init_linear(keys[8], embed_dim, embed_dim)
    params += init_linear(keys[9], embed_dim, embed_dim)
    return params


if __name__ == "__main__":
    B, X1_DIM, X2_DIM, HIDDEN, EMBED = 8, 16, 12, 32, 32

    root = jax.random.PRNGKey(0)
    k_x1, k_x2, k_y, k_p = jax.random.split(root, 4)

    x1 = jax.random.normal(k_x1, (B, X1_DIM), jnp.float32)
    x2 = jax.random.normal(k_x2, (B, X2_DIM), jnp.float32)
    # labels in a small class set so positives exist; shape (B, 1) like PyTorch y
    y = jax.random.randint(k_y, (B, 1), 0, 3, jnp.int32)

    params = make_params(k_p, X1_DIM, X2_DIM, HIDDEN, EMBED)

    loss = supcon_forward(x1, x2, y, params)
    jax.block_until_ready(loss)
    assert loss.shape == () and bool(jnp.isfinite(loss))
    print("KERNEL_OK")
</pallas_src>

<mosaic_0001>
module attributes {stable_mosaic.version = 11 : i64} {
  func.func @supcon_encoder_kernel(%arg0: i32, %arg1: memref<16x128xbf16, #tpu.memory_space<vmem>>, %arg2: memref<16x128xbf16, #tpu.memory_space<vmem>>, %arg3: memref<128x128xbf16, #tpu.memory_space<vmem>>, %arg4: memref<1x128xf32, #tpu.memory_space<vmem>>, %arg5: memref<128x128xbf16, #tpu.memory_space<vmem>>, %arg6: memref<1x128xf32, #tpu.memory_space<vmem>>, %arg7: memref<128x128xbf16, #tpu.memory_space<vmem>>, %arg8: memref<1x128xf32, #tpu.memory_space<vmem>>, %arg9: memref<128x128xbf16, #tpu.memory_space<vmem>>, %arg10: memref<1x128xf32, #tpu.memory_space<vmem>>, %arg11: memref<128x128xbf16, #tpu.memory_space<vmem>>, %arg12: memref<1x128xf32, #tpu.memory_space<vmem>>, %arg13: memref<128x128xbf16, #tpu.memory_space<vmem>>, %arg14: memref<1x128xf32, #tpu.memory_space<vmem>>, %arg15: memref<128x128xbf16, #tpu.memory_space<vmem>>, %arg16: memref<1x128xf32, #tpu.memory_space<vmem>>, %arg17: memref<128x128xbf16, #tpu.memory_space<vmem>>, %arg18: memref<1x128xf32, #tpu.memory_space<vmem>>, %arg19: memref<128x128xbf16, #tpu.memory_space<vmem>>, %arg20: memref<1x128xf32, #tpu.memory_space<vmem>>, %arg21: memref<128x128xbf16, #tpu.memory_space<vmem>>, %arg22: memref<1x128xf32, #tpu.memory_space<vmem>>, %arg23: memref<2x16x128xbf16, #tpu.memory_space<vmem>>) attributes {dimension_semantics = [#tpu.dimension_semantics<parallel>], iteration_bounds = array<i64: 1>, scalar_prefetch = 0 : i64, scratch_operands = 0 : i64, tpu.core_type = #tpu.core_type<tc>, window_params = [{transform_indices = @transform_0, window_bounds = array<i64: 16, 128>}, {transform_indices = @transform_1, window_bounds = array<i64: 16, 128>}, {pipeline_mode = #tpu.pipeline_mode<synchronous>, transform_indices = @transform_2, window_bounds = array<i64: 128, 128>}, {pipeline_mode = #tpu.pipeline_mode<synchronous>, transform_indices = @transform_3, window_bounds = array<i64: 1, 128>}, {pipeline_mode = #tpu.pipeline_mode<synchronous>, transform_indices = @transform_4, window_bounds = array<i64: 128, 128>}, {pipeline_mode = #tpu.pipeline_mode<synchronous>, transform_indices = @transform_5, window_bounds = array<i64: 1, 128>}, {pipeline_mode = #tpu.pipeline_mode<synchronous>, transform_indices = @transform_6, window_bounds = array<i64: 128, 128>}, {pipeline_mode = #tpu.pipeline_mode<synchronous>, transform_indices = @transform_7, window_bounds = array<i64: 1, 128>}, {pipeline_mode = #tpu.pipeline_mode<synchronous>, transform_indices = @transform_8, window_bounds = array<i64: 128, 128>}, {pipeline_mode = #tpu.pipeline_mode<synchronous>, transform_indices = @transform_9, window_bounds = array<i64: 1, 128>}, {pipeline_mode = #tpu.pipeline_mode<synchronous>, transform_indices = @transform_10, window_bounds = array<i64: 128, 128>}, {pipeline_mode = #tpu.pipeline_mode<synchronous>, transform_indices = @transform_11, window_bounds = array<i64: 1, 128>}, {pipeline_mode = #tpu.pipeline_mode<synchronous>, transform_indices = @transform_12, window_bounds = array<i64: 128, 128>}, {pipeline_mode = #tpu.pipeline_mode<synchronous>, transform_indices = @transform_13, window_bounds = array<i64: 1, 128>}, {pipeline_mode = #tpu.pipeline_mode<synchronous>, transform_indices = @transform_14, window_bounds = array<i64: 128, 128>}, {pipeline_mode = #tpu.pipeline_mode<synchronous>, transform_indices = @transform_15, window_bounds = array<i64: 1, 128>}, {pipeline_mode = #tpu.pipeline_mode<synchronous>, transform_indices = @transform_16, window_bounds = array<i64: 128, 128>}, {pipeline_mode = #tpu.pipeline_mode<synchronous>, transform_indices = @transform_17, window_bounds = array<i64: 1, 128>}, {pipeline_mode = #tpu.pipeline_mode<synchronous>, transform_indices = @transform_18, window_bounds = array<i64: 128, 128>}, {pipeline_mode = #tpu.pipeline_mode<synchronous>, transform_indices = @transform_19, window_bounds = array<i64: 1, 128>}, {pipeline_mode = #tpu.pipeline_mode<synchronous>, transform_indices = @transform_20, window_bounds = array<i64: 128, 128>}, {pipeline_mode = #tpu.pipeline_mode<synchronous>, transform_indices = @transform_21, window_bounds = array<i64: 1, 128>}, {transform_indices = @transform_22, window_bounds = array<i64: 2, 16, 128>}]} {
    %c0 = arith.constant 0 : index
    %c0_0 = arith.constant 0 : index
    %0 = vector.load %arg1[%c0, %c0_0] : memref<16x128xbf16, #tpu.memory_space<vmem>>, vector<16x128xbf16>
    %c0_1 = arith.constant 0 : index
    %c0_2 = arith.constant 0 : index
    %1 = vector.load %arg3[%c0_1, %c0_2] : memref<128x128xbf16, #tpu.memory_space<vmem>>, vector<128x128xbf16>
    %cst = arith.constant dense<0.000000e+00> : vector<16x128xf32>
    %2 = tpu.matmul %0, %1, %cst {dimension_numbers = #tpu.dot_dimension_numbers<[1], [0], [0], [1], [0, 0, 1, 1], [], []>} : vector<16x128xbf16>, vector<128x128xbf16>, vector<16x128xf32> -> vector<16x128xf32>
    %c0_3 = arith.constant 0 : index
    %c0_4 = arith.constant 0 : index
    %3 = vector.load %arg4[%c0_3, %c0_4] : memref<1x128xf32, #tpu.memory_space<vmem>>, vector<1x128xf32>
    %4 = vector.broadcast %3 : vector<1x128xf32> to vector<16x128xf32>
    %5 = arith.addf %2, %4 : vector<16x128xf32>
    %cst_5 = arith.constant 0.000000e+00 : f32
    %6 = vector.broadcast %cst_5 : f32 to vector<16x128xf32>
    %7 = arith.maximumf %5, %6 : vector<16x128xf32>
    %8 = arith.truncf %7 : vector<16x128xf32> to vector<16x128xbf16>
    %c0_6 = arith.constant 0 : index
    %c0_7 = arith.constant 0 : index
    %9 = vector.load %arg5[%c0_6, %c0_7] : memref<128x128xbf16, #tpu.memory_space<vmem>>, vector<128x128xbf16>
    %cst_8 = arith.constant dense<0.000000e+00> : vector<16x128xf32>
    %10 = tpu.matmul %8, %9, %cst_8 {dimension_numbers = #tpu.dot_dimension_numbers<[1], [0], [0], [1], [0, 0, 1, 1], [], []>} : vector<16x128xbf16>, vector<128x128xbf16>, vector<16x128xf32> -> vector<16x128xf32>
    %c0_9 = arith.constant 0 : index
    %c0_10 = arith.constant 0 : index
    %11 = vector.load %arg6[%c0_9, %c0_10] : memref<1x128xf32, #tpu.memory_space<vmem>>, vector<1x128xf32>
    %12 = vector.broadcast %11 : vector<1x128xf32> to vector<16x128xf32>
    %13 = arith.addf %10, %12 : vector<16x128xf32>
    %cst_11 = arith.constant 0.000000e+00 : f32
    %14 = vector.broadcast %cst_11 : f32 to vector<16x128xf32>
    %15 = arith.maximumf %13, %14 : vector<16x128xf32>
    %16 = arith.truncf %15 : vector<16x128xf32> to vector<16x128xbf16>
    %c0_12 = arith.constant 0 : index
    %c0_13 = arith.constant 0 : index
    %17 = vector.load %arg7[%c0_12, %c0_13] : memref<128x128xbf16, #tpu.memory_space<vmem>>, vector<128x128xbf16>
    %cst_14 = arith.constant dense<0.000000e+00> : vector<16x128xf32>
    %18 = tpu.matmul %16, %17, %cst_14 {dimension_numbers = #tpu.dot_dimension_numbers<[1], [0], [0], [1], [0, 0, 1, 1], [], []>} : vector<16x128xbf16>, vector<128x128xbf16>, vector<16x128xf32> -> vector<16x128xf32>
    %c0_15 = arith.constant 0 : index
    %c0_16 = arith.constant 0 : index
    %19 = vector.load %arg8[%c0_15, %c0_16] : memref<1x128xf32, #tpu.memory_space<vmem>>, vector<1x128xf32>
    %20 = vector.broadcast %19 : vector<1x128xf32> to vector<16x128xf32>
    %21 = arith.addf %18, %20 : vector<16x128xf32>
    %22 = arith.truncf %21 : vector<16x128xf32> to vector<16x128xbf16>
    %c0_17 = arith.constant 0 : index
    %c0_18 = arith.constant 0 : index
    %23 = vector.load %arg15[%c0_17, %c0_18] : memref<128x128xbf16, #tpu.memory_space<vmem>>, vector<128x128xbf16>
    %cst_19 = arith.constant dense<0.000000e+00> : vector<16x128xf32>
    %24 = tpu.matmul %22, %23, %cst_19 {dimension_numbers = #tpu.dot_dimension_numbers<[1], [0], [0], [1], [0, 0, 1, 1], [], []>} : vector<16x128xbf16>, vector<128x128xbf16>, vector<16x128xf32> -> vector<16x128xf32>
    %c0_20 = arith.constant 0 : index
    %c0_21 = arith.constant 0 : index
    %25 = vector.load %arg16[%c0_20, %c0_21] : memref<1x128xf32, #tpu.memory_space<vmem>>, vector<1x128xf32>
    %26 = vector.broadcast %25 : vector<1x128xf32> to vector<16x128xf32>
    %27 = arith.addf %24, %26 : vector<16x128xf32>
    %cst_22 = arith.constant 0.000000e+00 : f32
    %28 = vector.broadcast %cst_22 : f32 to vector<16x128xf32>
    %29 = arith.maximumf %27, %28 : vector<16x128xf32>
    %30 = arith.truncf %29 : vector<16x128xf32> to vector<16x128xbf16>
    %c0_23 = arith.constant 0 : index
    %c0_24 = arith.constant 0 : index
    %31 = vector.load %arg17[%c0_23, %c0_24] : memref<128x128xbf16, #tpu.memory_space<vmem>>, vector<128x128xbf16>
    %cst_25 = arith.constant dense<0.000000e+00> : vector<16x128xf32>
    %32 = tpu.matmul %30, %31, %cst_25 {dimension_numbers = #tpu.dot_dimension_numbers<[1], [0], [0], [1], [0, 0, 1, 1], [], []>} : vector<16x128xbf16>, vector<128x128xbf16>, vector<16x128xf32> -> vector<16x128xf32>
    %c0_26 = arith.constant 0 : index
    %c0_27 = arith.constant 0 : index
    %33 = vector.load %arg18[%c0_26, %c0_27] : memref<1x128xf32, #tpu.memory_space<vmem>>, vector<1x128xf32>
    %34 = vector.broadcast %33 : vector<1x128xf32> to vector<16x128xf32>
    %35 = arith.addf %32, %34 : vector<16x128xf32>
    %cst_28 = arith.constant 3.77964473 : f32
    %36 = vector.broadcast %cst_28 : f32 to vector<16x128xf32>
    %37 = arith.mulf %35, %36 : vector<16x128xf32>
    %38 = arith.truncf %37 : vector<16x128xf32> to vector<16x128xbf16>
    %c0_29 = arith.constant 0 : index
    %c0_30 = arith.constant 0 : index
    %c0_31 = arith.constant 0 : index
    %39 = vector.load %arg23[%c0_29, %c0_30, %c0_31] : memref<2x16x128xbf16, #tpu.memory_space<vmem>>, vector<1x16x128xbf16>
    %40 = vector.shape_cast %39 : vector<1x16x128xbf16> to vector<16x128xbf16>
    %41 = vector.shape_cast %38 : vector<16x128xbf16> to vector<1x16x128xbf16>
    tpu.vector_store %arg23[%c0_29, %c0_30, %c0_31], %41 {strides = array<i32>} : memref<2x16x128xbf16, #tpu.memory_space<vmem>>, vector<1x16x128xbf16>,
    %c0_32 = arith.constant 0 : index
    %c0_33 = arith.constant 0 : index
    %42 = vector.load %arg2[%c0_32, %c0_33] : memref<16x128xbf16, #tpu.memory_space<vmem>>, vector<16x128xbf16>
    %c0_34 = arith.constant 0 : index
    %c0_35 = arith.constant 0 : index
    %43 = vector.load %arg9[%c0_34, %c0_35] : memref<128x128xbf16, #tpu.memory_space<vmem>>, vector<128x128xbf16>
    %cst_36 = arith.constant dense<0.000000e+00> : vector<16x128xf32>
    %44 = tpu.matmul %42, %43, %cst_36 {dimension_numbers = #tpu.dot_dimension_numbers<[1], [0], [0], [1], [0, 0, 1, 1], [], []>} : vector<16x128xbf16>, vector<128x128xbf16>, vector<16x128xf32> -> vector<16x128xf32>
    %c0_37 = arith.constant 0 : index
    %c0_38 = arith.constant 0 : index
    %45 = vector.load %arg10[%c0_37, %c0_38] : memref<1x128xf32, #tpu.memory_space<vmem>>, vector<1x128xf32>
    %46 = vector.broadcast %45 : vector<1x128xf32> to vector<16x128xf32>
    %47 = arith.addf %44, %46 : vector<16x128xf32>
    %cst_39 = arith.constant 0.000000e+00 : f32
    %48 = vector.broadcast %cst_39 : f32 to vector<16x128xf32>
    %49 = arith.maximumf %47, %48 : vector<16x128xf32>
    %50 = arith.truncf %49 : vector<16x128xf32> to vector<16x128xbf16>
    %c0_40 = arith.constant 0 : index
    %c0_41 = arith.constant 0 : index
    %51 = vector.load %arg11[%c0_40, %c0_41] : memref<128x128xbf16, #tpu.memory_space<vmem>>, vector<128x128xbf16>
    %cst_42 = arith.constant dense<0.000000e+00> : vector<16x128xf32>
    %52 = tpu.matmul %50, %51, %cst_42 {dimension_numbers = #tpu.dot_dimension_numbers<[1], [0], [0], [1], [0, 0, 1, 1], [], []>} : vector<16x128xbf16>, vector<128x128xbf16>, vector<16x128xf32> -> vector<16x128xf32>
    %c0_43 = arith.constant 0 : index
    %c0_44 = arith.constant 0 : index
    %53 = vector.load %arg12[%c0_43, %c0_44] : memref<1x128xf32, #tpu.memory_space<vmem>>, vector<1x128xf32>
    %54 = vector.broadcast %53 : vector<1x128xf32> to vector<16x128xf32>
    %55 = arith.addf %52, %54 : vector<16x128xf32>
    %cst_45 = arith.constant 0.000000e+00 : f32
    %56 = vector.broadcast %cst_45 : f32 to vector<16x128xf32>
    %57 = arith.maximumf %55, %56 : vector<16x128xf32>
    %58 = arith.truncf %57 : vector<16x128xf32> to vector<16x128xbf16>
    %c0_46 = arith.constant 0 : index
    %c0_47 = arith.constant 0 : index
    %59 = vector.load %arg13[%c0_46, %c0_47] : memref<128x128xbf16, #tpu.memory_space<vmem>>, vector<128x128xbf16>
    %cst_48 = arith.constant dense<0.000000e+00> : vector<16x128xf32>
    %60 = tpu.matmul %58, %59, %cst_48 {dimension_numbers = #tpu.dot_dimension_numbers<[1], [0], [0], [1], [0, 0, 1, 1], [], []>} : vector<16x128xbf16>, vector<128x128xbf16>, vector<16x128xf32> -> vector<16x128xf32>
    %c0_49 = arith.constant 0 : index
    %c0_50 = arith.constant 0 : index
    %61 = vector.load %arg14[%c0_49, %c0_50] : memref<1x128xf32, #tpu.memory_space<vmem>>, vector<1x128xf32>
    %62 = vector.broadcast %61 : vector<1x128xf32> to vector<16x128xf32>
    %63 = arith.addf %60, %62 : vector<16x128xf32>
    %64 = arith.truncf %63 : vector<16x128xf32> to vector<16x128xbf16>
    %c0_51 = arith.constant 0 : index
    %c0_52 = arith.constant 0 : index
    %65 = vector.load %arg19[%c0_51, %c0_52] : memref<128x128xbf16, #tpu.memory_space<vmem>>, vector<128x128xbf16>
    %cst_53 = arith.constant dense<0.000000e+00> : vector<16x128xf32>
    %66 = tpu.matmul %64, %65, %cst_53 {dimension_numbers = #tpu.dot_dimension_numbers<[1], [0], [0], [1], [0, 0, 1, 1], [], []>} : vector<16x128xbf16>, vector<128x128xbf16>, vector<16x128xf32> -> vector<16x128xf32>
    %c0_54 = arith.constant 0 : index
    %c0_55 = arith.constant 0 : index
    %67 = vector.load %arg20[%c0_54, %c0_55] : memref<1x128xf32, #tpu.memory_space<vmem>>, vector<1x128xf32>
    %68 = vector.broadcast %67 : vector<1x128xf32> to vector<16x128xf32>
    %69 = arith.addf %66, %68 : vector<16x128xf32>
    %cst_56 = arith.constant 0.000000e+00 : f32
    %70 = vector.broadcast %cst_56 : f32 to vector<16x128xf32>
    %71 = arith.maximumf %69, %70 : vector<16x128xf32>
    %72 = arith.truncf %71 : vector<16x128xf32> to vector<16x128xbf16>
    %c0_57 = arith.constant 0 : index
    %c0_58 = arith.constant 0 : index
    %73 = vector.load %arg21[%c0_57, %c0_58] : memref<128x128xbf16, #tpu.memory_space<vmem>>, vector<128x128xbf16>
    %cst_59 = arith.constant dense<0.000000e+00> : vector<16x128xf32>
    %74 = tpu.matmul %72, %73, %cst_59 {dimension_numbers = #tpu.dot_dimension_numbers<[1], [0], [0], [1], [0, 0, 1, 1], [], []>} : vector<16x128xbf16>, vector<128x128xbf16>, vector<16x128xf32> -> vector<16x128xf32>
    %c0_60 = arith.constant 0 : index
    %c0_61 = arith.constant 0 : index
    %75 = vector.load %arg22[%c0_60, %c0_61] : memref<1x128xf32, #tpu.memory_space<vmem>>, vector<1x128xf32>
    %76 = vector.broadcast %75 : vector<1x128xf32> to vector<16x128xf32>
    %77 = arith.addf %74, %76 : vector<16x128xf32>
    %cst_62 = arith.constant 3.77964473 : f32
    %78 = vector.broadcast %cst_62 : f32 to vector<16x128xf32>
    %79 = arith.mulf %77, %78 : vector<16x128xf32>
    %80 = arith.truncf %79 : vector<16x128xf32> to vector<16x128xbf16>
    %c1 = arith.constant 1 : index
    %c0_63 = arith.constant 0 : index
    %c0_64 = arith.constant 0 : index
    %81 = vector.load %arg23[%c1, %c0_63, %c0_64] : memref<2x16x128xbf16, #tpu.memory_space<vmem>>, vector<1x16x128xbf16>
    %82 = vector.shape_cast %81 : vector<1x16x128xbf16> to vector<16x128xbf16>
    %83 = vector.shape_cast %80 : vector<16x128xbf16> to vector<1x16x128xbf16>
    tpu.vector_store %arg23[%c1, %c0_63, %c0_64], %83 {strides = array<i32>} : memref<2x16x128xbf16, #tpu.memory_space<vmem>>, vector<1x16x128xbf16>,
    return
  }
  func.func @transform_0(%arg0: i32) -> (i32, i32) {
    %c0_i32 = arith.constant 0 : i32
    %c0_i32_0 = arith.constant 0 : i32
    return %arg0, %c0_i32 : i32, i32
  }
  func.func @transform_1(%arg0: i32) -> (i32, i32) {
    %c0_i32 = arith.constant 0 : i32
    %c0_i32_0 = arith.constant 0 : i32
    return %arg0, %c0_i32 : i32, i32
  }
  func.func @transform_2(%arg0: i32) -> (i32, i32) {
    %c0_i32 = arith.constant 0 : i32
    %c0_i32_0 = arith.constant 0 : i32
    %c0_i32_1 = arith.constant 0 : i32
    return %c0_i32, %c0_i32_0 : i32, i32
  }
  func.func @transform_3(%arg0: i32) -> (i32, i32) {
    %c0_i32 = arith.constant 0 : i32
    %c0_i32_0 = arith.constant 0 : i32
    %c0_i32_1 = arith.constant 0 : i32
    return %c0_i32, %c0_i32_0 : i32, i32
  }
  func.func @transform_4(%arg0: i32) -> (i32, i32) {
    %c0_i32 = arith.constant 0 : i32
    %c0_i32_0 = arith.constant 0 : i32
    %c0_i32_1 = arith.constant 0 : i32
    return %c0_i32, %c0_i32_0 : i32, i32
  }
  func.func @transform_5(%arg0: i32) -> (i32, i32) {
    %c0_i32 = arith.constant 0 : i32
    %c0_i32_0 = arith.constant 0 : i32
    %c0_i32_1 = arith.constant 0 : i32
    return %c0_i32, %c0_i32_0 : i32, i32
  }
  func.func @transform_6(%arg0: i32) -> (i32, i32) {
    %c0_i32 = arith.constant 0 : i32
    %c0_i32_0 = arith.constant 0 : i32
    %c0_i32_1 = arith.constant 0 : i32
    return %c0_i32, %c0_i32_0 : i32, i32
  }
  func.func @transform_7(%arg0: i32) -> (i32, i32) {
    %c0_i32 = arith.constant 0 : i32
    %c0_i32_0 = arith.constant 0 : i32
    %c0_i32_1 = arith.constant 0 : i32
    return %c0_i32, %c0_i32_0 : i32, i32
  }
  func.func @transform_8(%arg0: i32) -> (i32, i32) {
    %c0_i32 = arith.constant 0 : i32
    %c0_i32_0 = arith.constant 0 : i32
    %c0_i32_1 = arith.constant 0 : i32
    return %c0_i32, %c0_i32_0 : i32, i32
  }
  func.func @transform_9(%arg0: i32) -> (i32, i32) {
    %c0_i32 = arith.constant 0 : i32
    %c0_i32_0 = arith.constant 0 : i32
    %c0_i32_1 = arith.constant 0 : i32
    return %c0_i32, %c0_i32_0 : i32, i32
  }
  func.func @transform_10(%arg0: i32) -> (i32, i32) {
    %c0_i32 = arith.constant 0 : i32
    %c0_i32_0 = arith.constant 0 : i32
    %c0_i32_1 = arith.constant 0 : i32
    return %c0_i32, %c0_i32_0 : i32, i32
  }
  func.func @transform_11(%arg0: i32) -> (i32, i32) {
    %c0_i32 = arith.constant 0 : i32
    %c0_i32_0 = arith.constant 0 : i32
    %c0_i32_1 = arith.constant 0 : i32
    return %c0_i32, %c0_i32_0 : i32, i32
  }
  func.func @transform_12(%arg0: i32) -> (i32, i32) {
    %c0_i32 = arith.constant 0 : i32
    %c0_i32_0 = arith.constant 0 : i32
    %c0_i32_1 = arith.constant 0 : i32
    return %c0_i32, %c0_i32_0 : i32, i32
  }
  func.func @transform_13(%arg0: i32) -> (i32, i32) {
    %c0_i32 = arith.constant 0 : i32
    %c0_i32_0 = arith.constant 0 : i32
    %c0_i32_1 = arith.constant 0 : i32
    return %c0_i32, %c0_i32_0 : i32, i32
  }
  func.func @transform_14(%arg0: i32) -> (i32, i32) {
    %c0_i32 = arith.constant 0 : i32
    %c0_i32_0 = arith.constant 0 : i32
    %c0_i32_1 = arith.constant 0 : i32
    return %c0_i32, %c0_i32_0 : i32, i32
  }
  func.func @transform_15(%arg0: i32) -> (i32, i32) {
    %c0_i32 = arith.constant 0 : i32
    %c0_i32_0 = arith.constant 0 : i32
    %c0_i32_1 = arith.constant 0 : i32
    return %c0_i32, %c0_i32_0 : i32, i32
  }
  func.func @transform_16(%arg0: i32) -> (i32, i32) {
    %c0_i32 = arith.constant 0 : i32
    %c0_i32_0 = arith.constant 0 : i32
    %c0_i32_1 = arith.constant 0 : i32
    return %c0_i32, %c0_i32_0 : i32, i32
  }
  func.func @transform_17(%arg0: i32) -> (i32, i32) {
    %c0_i32 = arith.constant 0 : i32
    %c0_i32_0 = arith.constant 0 : i32
    %c0_i32_1 = arith.constant 0 : i32
    return %c0_i32, %c0_i32_0 : i32, i32
  }
  func.func @transform_18(%arg0: i32) -> (i32, i32) {
    %c0_i32 = arith.constant 0 : i32
    %c0_i32_0 = arith.constant 0 : i32
    %c0_i32_1 = arith.constant 0 : i32
    return %c0_i32, %c0_i32_0 : i32, i32
  }
  func.func @transform_19(%arg0: i32) -> (i32, i32) {
    %c0_i32 = arith.constant 0 : i32
    %c0_i32_0 = arith.constant 0 : i32
    %c0_i32_1 = arith.constant 0 : i32
    return %c0_i32, %c0_i32_0 : i32, i32
  }
  func.func @transform_20(%arg0: i32) -> (i32, i32) {
    %c0_i32 = arith.constant 0 : i32
    %c0_i32_0 = arith.constant 0 : i32
    %c0_i32_1 = arith.constant 0 : i32
    return %c0_i32, %c0_i32_0 : i32, i32
  }
  func.func @transform_21(%arg0: i32) -> (i32, i32) {
    %c0_i32 = arith.constant 0 : i32
    %c0_i32_0 = arith.constant 0 : i32
    %c0_i32_1 = arith.constant 0 : i32
    return %c0_i32, %c0_i32_0 : i32, i32
  }
  func.func @transform_22(%arg0: i32) -> (i32, i32, i32) {
    %c0_i32 = arith.constant 0 : i32
    %c0_i32_0 = arith.constant 0 : i32
    %c0_i32_1 = arith.constant 0 : i32
    return %c0_i32, %arg0, %c0_i32_0 : i32, i32, i32
  }
}

module attributes {stable_mosaic.version = 11 : i64} {
  func.func @supcon_loss_kernel(%arg0: i32, %arg1: i32, %arg2: memref<32x128xbf16, #tpu.memory_space<vmem>>, %arg3: memref<128x32xbf16, #tpu.memory_space<vmem>>, %arg4: memref<32x1xi32, #tpu.memory_space<vmem>>, %arg5: memref<1x32xi32, #tpu.memory_space<vmem>>, %arg6: memref<32x1xf32, #tpu.memory_space<vmem>>, %arg7: memref<1x32xf32, #tpu.memory_space<vmem>>, %arg8: memref<32x1xf32, #tpu.memory_space<vmem>>, %arg9: memref<32x1xf32, #tpu.memory_space<vmem>>, %arg10: memref<32x1xf32, #tpu.memory_space<vmem>>, %arg11: memref<32x1xf32, #tpu.memory_space<vmem>>, %arg12: memref<32x1xf32, #tpu.memory_space<vmem>>) attributes {dimension_semantics = [#tpu.dimension_semantics<parallel>, #tpu.dimension_semantics<arbitrary>], iteration_bounds = array<i64: 1, 1>, scalar_prefetch = 0 : i64, scratch_operands = 4 : i64, tpu.core_type = #tpu.core_type<tc>, window_params = [{transform_indices = @transform_0, window_bounds = array<i64: 32, 128>}, {transform_indices = @transform_1, window_bounds = array<i64: 128, 32>}, {transform_indices = @transform_2, window_bounds = array<i64: 32, 1>}, {transform_indices = @transform_3, window_bounds = array<i64: 1, 32>}, {transform_indices = @transform_4, window_bounds = array<i64: 32, 1>}, {transform_indices = @transform_5, window_bounds = array<i64: 1, 32>}, {transform_indices = @transform_6, window_bounds = array<i64: 32, 1>}]} {
    %c0_i32 = arith.constant 0 : i32
    %0 = arith.cmpi eq, %arg1, %c0_i32 : i32
    %1 = arith.extui %0 : i1 to i32
    %c0_i32_0 = arith.constant 0 : i32
    %2 = arith.cmpi ne, %1, %c0_i32_0 : i32
    scf.if %2 {
      %cst_39 = arith.constant -1.000000e+09 : f32
      %65 = vector.broadcast %cst_39 : f32 to vector<32x1xf32>
      %c0_40 = arith.constant 0 : index
      %c0_41 = arith.constant 0 : index
      %66 = vector.load %arg9[%c0_40, %c0_41] : memref<32x1xf32, #tpu.memory_space<vmem>>, vector<32x1xf32>
      tpu.vector_store %arg9[%c0_40, %c0_41], %65 {strides = array<i32>} : memref<32x1xf32, #tpu.memory_space<vmem>>, vector<32x1xf32>,
      %cst_42 = arith.constant 0.000000e+00 : f32
      %67 = vector.broadcast %cst_42 : f32 to vector<32x1xf32>
      %c0_43 = arith.constant 0 : index
      %c0_44 = arith.constant 0 : index
      %68 = vector.load %arg10[%c0_43, %c0_44] : memref<32x1xf32, #tpu.memory_space<vmem>>, vector<32x1xf32>
      tpu.vector_store %arg10[%c0_43, %c0_44], %67 {strides = array<i32>} : memref<32x1xf32, #tpu.memory_space<vmem>>, vector<32x1xf32>,
      %cst_45 = arith.constant 0.000000e+00 : f32
      %69 = vector.broadcast %cst_45 : f32 to vector<32x1xf32>
      %c0_46 = arith.constant 0 : index
      %c0_47 = arith.constant 0 : index
      %70 = vector.load %arg11[%c0_46, %c0_47] : memref<32x1xf32, #tpu.memory_space<vmem>>, vector<32x1xf32>
      tpu.vector_store %arg11[%c0_46, %c0_47], %69 {strides = array<i32>} : memref<32x1xf32, #tpu.memory_space<vmem>>, vector<32x1xf32>,
      %cst_48 = arith.constant 0.000000e+00 : f32
      %71 = vector.broadcast %cst_48 : f32 to vector<32x1xf32>
      %c0_49 = arith.constant 0 : index
      %c0_50 = arith.constant 0 : index
      %72 = vector.load %arg12[%c0_49, %c0_50] : memref<32x1xf32, #tpu.memory_space<vmem>>, vector<32x1xf32>
      tpu.vector_store %arg12[%c0_49, %c0_50], %71 {strides = array<i32>} : memref<32x1xf32, #tpu.memory_space<vmem>>, vector<32x1xf32>,
    } else {
    }
    %c0 = arith.constant 0 : index
    %c0_1 = arith.constant 0 : index
    %3 = vector.load %arg2[%c0, %c0_1] : memref<32x128xbf16, #tpu.memory_space<vmem>>, vector<32x128xbf16>
    %c0_2 = arith.constant 0 : index
    %c0_3 = arith.constant 0 : index
    %4 = vector.load %arg3[%c0_2, %c0_3] : memref<128x32xbf16, #tpu.memory_space<vmem>>, vector<128x32xbf16>
    %cst = arith.constant dense<0.000000e+00> : vector<32x32xf32>
    %5 = tpu.matmul %3, %4, %cst {dimension_numbers = #tpu.dot_dimension_numbers<[1], [0], [0], [1], [0, 0, 1, 1], [], []>} : vector<32x128xbf16>, vector<128x32xbf16>, vector<32x32xf32> -> vector<32x32xf32>
    %c32_i32 = arith.constant 32 : i32
    %6 = arith.muli %arg0, %c32_i32 : i32
    %7 = tpu.iota {dimensions = array<i32: 0>} : vector<32x32xi32>
    %8 = vector.broadcast %6 : i32 to vector<32x32xi32>
    %9 = arith.addi %8, %7 : vector<32x32xi32>
    %c32_i32_4 = arith.constant 32 : i32
    %10 = arith.muli %arg1, %c32_i32_4 : i32
    %11 = tpu.iota {dimensions = array<i32: 1>} : vector<32x32xi32>
    %12 = vector.broadcast %10 : i32 to vector<32x32xi32>
    %13 = arith.addi %12, %11 : vector<32x32xi32>
    %14 = arith.cmpi eq, %9, %13 : vector<32x32xi32>
    %c0_5 = arith.constant 0 : index
    %c0_6 = arith.constant 0 : index
    %15 = vector.load %arg7[%c0_5, %c0_6] : memref<1x32xf32, #tpu.memory_space<vmem>>, vector<1x32xf32>
    %cst_7 = arith.constant 5.000000e-01 : f32
    %16 = vector.broadcast %cst_7 : f32 to vector<1x32xf32>
    %17 = arith.cmpf ogt, %15, %16 : vector<1x32xf32>
    %cst_8 = arith.constant dense<true> : vector<1x32xi1>
    %18 = arith.xori %17, %cst_8 : vector<1x32xi1>
    %19 = vector.broadcast %18 : vector<1x32xi1> to vector<32x32xi1>
    %20 = arith.ori %14, %19 : vector<32x32xi1>
    %cst_9 = arith.constant -1.000000e+30 : f32
    %21 = vector.broadcast %cst_9 : f32 to vector<32x32xf32>
    %22 = arith.select %20, %21, %5 : vector<32x32xi1>, vector<32x32xf32>
    %c0_10 = arith.constant 0 : index
    %c0_11 = arith.constant 0 : index
    %23 = vector.load %arg4[%c0_10, %c0_11] : memref<32x1xi32, #tpu.memory_space<vmem>>, vector<32x1xi32>
    %c0_12 = arith.constant 0 : index
    %c0_13 = arith.constant 0 : index
    %24 = vector.load %arg5[%c0_12, %c0_13] : memref<1x32xi32, #tpu.memory_space<vmem>>, vector<1x32xi32>
    %25 = vector.broadcast %23 : vector<32x1xi32> to vector<32x32xi32>
    %26 = vector.broadcast %24 : vector<1x32xi32> to vector<32x32xi32>
    %27 = arith.cmpi eq, %25, %26 : vector<32x32xi32>
    %cst_14 = arith.constant dense<true> : vector<32x32xi1>
    %28 = arith.xori %14, %cst_14 : vector<32x32xi1>
    %29 = arith.andi %27, %28 : vector<32x32xi1>
    %30 = vector.broadcast %17 : vector<1x32xi1> to vector<32x32xi1>
    %31 = arith.andi %29, %30 : vector<32x32xi1>
    %32 = arith.extui %31 : vector<32x32xi1> to vector<32x32xi32>
    %33 = arith.sitofp %32 : vector<32x32xi32> to vector<32x32xf32>
    %c0_15 = arith.constant 0 : index
    %c0_16 = arith.constant 0 : index
    %34 = vector.load %arg9[%c0_15, %c0_16] : memref<32x1xf32, #tpu.memory_space<vmem>>, vector<32x1xf32>
    %cst_17 = arith.constant dense<0xFF800000> : vector<32xf32>
    %35 = vector.multi_reduction <maximumf>, %22, %cst_17 [1] : vector<32x32xf32> to vector<32xf32>
    %36 = vector.shape_cast %35 : vector<32xf32> to vector<32x1xf32>
    %37 = arith.maximumf %34, %36 : vector<32x1xf32>
    %c0_18 = arith.constant 0 : index
    %c0_19 = arith.constant 0 : index
    %38 = vector.load %arg9[%c0_18, %c0_19] : memref<32x1xf32, #tpu.memory_space<vmem>>, vector<32x1xf32>
    %39 = arith.subf %38, %37 : vector<32x1xf32>
    %40 = math.exp %39 : vector<32x1xf32>
    %c0_20 = arith.constant 0 : index
    %c0_21 = arith.constant 0 : index
    %41 = vector.load %arg10[%c0_20, %c0_21] : memref<32x1xf32, #tpu.memory_space<vmem>>, vector<32x1xf32>
    %42 = arith.mulf %40, %41 : vector<32x1xf32>
    %43 = vector.broadcast %37 : vector<32x1xf32> to vector<32x32xf32>
    %44 = arith.subf %22, %43 : vector<32x32xf32>
    %45 = math.exp %44 : vector<32x32xf32>
    %cst_22 = arith.constant dense<0.000000e+00> : vector<32xf32>
    %46 = vector.multi_reduction <add>, %45, %cst_22 [1] : vector<32x32xf32> to vector<32xf32>
    %47 = vector.shape_cast %46 : vector<32xf32> to vector<32x1xf32>
    %48 = arith.addf %42, %47 : vector<32x1xf32>
    %c0_23 = arith.constant 0 : index
    %c0_24 = arith.constant 0 : index
    %49 = vector.load %arg10[%c0_23, %c0_24] : memref<32x1xf32, #tpu.memory_space<vmem>>, vector<32x1xf32>
    tpu.vector_store %arg10[%c0_23, %c0_24], %48 {strides = array<i32>} : memref<32x1xf32, #tpu.memory_space<vmem>>, vector<32x1xf32>,
    %c0_25 = arith.constant 0 : index
    %c0_26 = arith.constant 0 : index
    %50 = vector.load %arg11[%c0_25, %c0_26] : memref<32x1xf32, #tpu.memory_space<vmem>>, vector<32x1xf32>
    %51 = arith.mulf %33, %22 : vector<32x32xf32>
    %cst_27 = arith.constant dense<0.000000e+00> : vector<32xf32>
    %52 = vector.multi_reduction <add>, %51, %cst_27 [1] : vector<32x32xf32> to vector<32xf32>
    %53 = vector.shape_cast %52 : vector<32xf32> to vector<32x1xf32>
    %54 = arith.addf %50, %53 : vector<32x1xf32>
    %c0_28 = arith.constant 0 : index
    %c0_29 = arith.constant 0 : index
    %55 = vector.load %arg11[%c0_28, %c0_29] : memref<32x1xf32, #tpu.memory_space<vmem>>, vector<32x1xf32>
    tpu.vector_store %arg11[%c0_28, %c0_29], %54 {strides = array<i32>} : memref<32x1xf32, #tpu.memory_space<vmem>>, vector<32x1xf32>,
    %c0_30 = arith.constant 0 : index
    %c0_31 = arith.constant 0 : index
    %56 = vector.load %arg12[%c0_30, %c0_31] : memref<32x1xf32, #tpu.memory_space<vmem>>, vector<32x1xf32>
    %cst_32 = arith.constant dense<0.000000e+00> : vector<32xf32>
    %57 = vector.multi_reduction <add>, %33, %cst_32 [1] : vector<32x32xf32> to vector<32xf32>
    %58 = vector.shape_cast %57 : vector<32xf32> to vector<32x1xf32>
    %59 = arith.addf %56, %58 : vector<32x1xf32>
    %c0_33 = arith.constant 0 : index
    %c0_34 = arith.constant 0 : index
    %60 = vector.load %arg12[%c0_33, %c0_34] : memref<32x1xf32, #tpu.memory_space<vmem>>, vector<32x1xf32>
    tpu.vector_store %arg12[%c0_33, %c0_34], %59 {strides = array<i32>} : memref<32x1xf32, #tpu.memory_space<vmem>>, vector<32x1xf32>,
    %c0_35 = arith.constant 0 : index
    %c0_36 = arith.constant 0 : index
    %61 = vector.load %arg9[%c0_35, %c0_36] : memref<32x1xf32, #tpu.memory_space<vmem>>, vector<32x1xf32>
    tpu.vector_store %arg9[%c0_35, %c0_36], %37 {strides = array<i32>} : memref<32x1xf32, #tpu.memory_space<vmem>>, vector<32x1xf32>,
    %c0_i32_37 = arith.constant 0 : i32
    %62 = arith.cmpi eq, %arg1, %c0_i32_37 : i32
    %63 = arith.extui %62 : i1 to i32
    %c0_i32_38 = arith.constant 0 : i32
    %64 = arith.cmpi ne, %63, %c0_i32_38 : i32
    scf.if %64 {
      %c0_39 = arith.constant 0 : index
      %c0_40 = arith.constant 0 : index
      %65 = vector.load %arg12[%c0_39, %c0_40] : memref<32x1xf32, #tpu.memory_space<vmem>>, vector<32x1xf32>
      %cst_41 = arith.constant 1.000000e+00 : f32
      %66 = vector.broadcast %cst_41 : f32 to vector<32x1xf32>
      %67 = arith.maximumf %65, %66 : vector<32x1xf32>
      %c0_42 = arith.constant 0 : index
      %c0_43 = arith.constant 0 : index
      %68 = vector.load %arg9[%c0_42, %c0_43] : memref<32x1xf32, #tpu.memory_space<vmem>>, vector<32x1xf32>
      %c0_44 = arith.constant 0 : index
      %c0_45 = arith.constant 0 : index
      %69 = vector.load %arg10[%c0_44, %c0_45] : memref<32x1xf32, #tpu.memory_space<vmem>>, vector<32x1xf32>
      %70 = math.log %69 : vector<32x1xf32>
      %71 = arith.addf %68, %70 : vector<32x1xf32>
      %c0_46 = arith.constant 0 : index
      %c0_47 = arith.constant 0 : index
      %72 = vector.load %arg11[%c0_46, %c0_47] : memref<32x1xf32, #tpu.memory_space<vmem>>, vector<32x1xf32>
      %73 = arith.mulf %65, %71 : vector<32x1xf32>
      %74 = arith.subf %72, %73 : vector<32x1xf32>
      %75 = tpu.reciprocal %67 {approx = true} : vector<32x1xf32> -> vector<32x1xf32>
      %76 = arith.mulf %74, %75 : vector<32x1xf32>
      %cst_48 = arith.constant -1.000000e+00 : f32
      %77 = vector.broadcast %cst_48 : f32 to vector<32x1xf32>
      %78 = arith.mulf %77, %76 : vector<32x1xf32>
      %c0_49 = arith.constant 0 : index
      %c0_50 = arith.constant 0 : index
      %79 = vector.load %arg6[%c0_49, %c0_50] : memref<32x1xf32, #tpu.memory_space<vmem>>, vector<32x1xf32>
      %80 = arith.mulf %78, %79 : vector<32x1xf32>
      %c0_51 = arith.constant 0 : index
      %c0_52 = arith.constant 0 : index
      %81 = vector.load %arg8[%c0_51, %c0_52] : memref<32x1xf32, #tpu.memory_space<vmem>>, vector<32x1xf32>
      tpu.vector_store %arg8[%c0_51, %c0_52], %80 {strides = array<i32>} : memref<32x1xf32, #tpu.memory_space<vmem>>, vector<32x1xf32>,
    } else {
    }
    return
  }
  func.func @transform_0(%arg0: i32, %arg1: i32) -> (i32, i32) {
    %c0_i32 = arith.constant 0 : i32
    %c0_i32_0 = arith.constant 0 : i32
    return %arg0, %c0_i32 : i32, i32
  }
  func.func @transform_1(%arg0: i32, %arg1: i32) -> (i32, i32) {
    %c0_i32 = arith.constant 0 : i32
    %c0_i32_0 = arith.constant 0 : i32
    return %c0_i32, %arg1 : i32, i32
  }
  func.func @transform_2(%arg0: i32, %arg1: i32) -> (i32, i32) {
    %c0_i32 = arith.constant 0 : i32
    %c0_i32_0 = arith.constant 0 : i32
    return %arg0, %c0_i32 : i32, i32
  }
  func.func @transform_3(%arg0: i32, %arg1: i32) -> (i32, i32) {
    %c0_i32 = arith.constant 0 : i32
    %c0_i32_0 = arith.constant 0 : i32
    return %c0_i32, %arg1 : i32, i32
  }
  func.func @transform_4(%arg0: i32, %arg1: i32) -> (i32, i32) {
    %c0_i32 = arith.constant 0 : i32
    %c0_i32_0 = arith.constant 0 : i32
    return %arg0, %c0_i32 : i32, i32
  }
  func.func @transform_5(%arg0: i32, %arg1: i32) -> (i32, i32) {
    %c0_i32 = arith.constant 0 : i32
    %c0_i32_0 = arith.constant 0 : i32
    return %c0_i32, %arg1 : i32, i32
  }
  func.func @transform_6(%arg0: i32, %arg1: i32) -> (i32, i32) {
    %c0_i32 = arith.constant 0 : i32
    %c0_i32_0 = arith.constant 0 : i32
    return %arg0, %c0_i32 : i32, i32
  }
}

</mosaic_0001>

<llo_original>
// kernel: _supcon_forward.3
$region0: #{_supcon_forward.3}
  #allocation0 [shape = 'u32[]', space=smem, size = 0x4, offset = 0x4, fixed_abs, tag = 'smem constant byte address 0x4 - core index']
  #allocation1 [shape = 'u32[144,128]{1,0:T(1,128)}', space=vmem, size = 0x12000, scoped, tag = 'internal scratch']
  #allocation2 [shape = 'f32[32,1]{1,0:T(8,128)}', space=vmem, size = 0x4000, scoped, tag = 'scratch operand']
  #allocation3 [shape = 'f32[32,1]{1,0:T(8,128)}', space=vmem, size = 0x4000, scoped, tag = 'scratch operand']
  #allocation4 [shape = 'f32[32,1]{1,0:T(8,128)}', space=vmem, size = 0x4000, scoped, tag = 'scratch operand']
  #allocation5 [shape = 'f32[32,1]{1,0:T(8,128)}', space=vmem, size = 0x4000, scoped, tag = 'scratch operand']
  %s0 = inlined_call_operand.vmem [shape: bf16[32,128], index: 0, kind: input, shape index: {}]
  %s1 = inlined_call_operand.vmem [shape: bf16[128,32], index: 1, kind: input, shape index: {}]
  %s2 = inlined_call_operand.vmem [shape: s32[32,1], index: 2, kind: input, shape index: {}]
  %s3 = inlined_call_operand.vmem [shape: s32[1,32], index: 3, kind: input, shape index: {}]
  %s4 = inlined_call_operand.vmem [shape: f32[32,1], index: 4, kind: input, shape index: {}]
  %s5 = inlined_call_operand.vmem [shape: f32[1,32], index: 5, kind: input, shape index: {}]
  %s6 = inlined_call_operand.vmem [shape: f32[32,1], index: 6, kind: output, shape index: {}]
  %s7 = sld [smem:[#allocation0]]
  $region42: #{_supcon_forward.3} parent=0
    _
  %s9 = ssub.s32 1, %s7
  %s10 = scalar_select 0, %s9, %s7
  // Predicated region
  $region2: #{_supcon_forward.3} parent=0 // pred_check
    _
  $region3: #{_supcon_forward.3} parent=0 // pred_check_branch
    %12 = sbr.rel (0) target = $region5
  $region4: #{_supcon_forward.3} parent=0 // pred_region
    _
  $region5: #{_supcon_forward.3} parent=0 // pred_fallthru
    _
  // Predicated region
  $region6: #{_supcon_forward.3} parent=0 // pred_check
    _
  $region7: #{_supcon_forward.3} parent=0 // pred_check_branch
    %14 = sbr.rel (0) target = $region9
  $region8: #{_supcon_forward.3} parent=0 // pred_region
    _
  $region9: #{_supcon_forward.3} parent=0 // pred_fallthru
    _
  // Predicated region
  $region10: #{_supcon_forward.3} parent=0 // pred_check
    _
  $region11: #{_supcon_forward.3} parent=0 // pred_check_branch
    %16 = sbr.rel (0) target = $region13
  $region12: #{_supcon_forward.3} parent=0 // pred_region
    _
  $region13: #{_supcon_forward.3} parent=0 // pred_fallthru
    _
  // Predicated region
  $region14: #{_supcon_forward.3} parent=0 // pred_check
    _
  $region15: #{_supcon_forward.3} parent=0 // pred_check_branch
    %18 = sbr.rel (0) target = $region17
  $region16: #{_supcon_forward.3} parent=0 // pred_region
    _
  $region17: #{_supcon_forward.3} parent=0 // pred_fallthru
    _
  // Predicated region
  $region18: #{_supcon_forward.3} parent=0 // pred_check
    _
  $region19: #{_supcon_forward.3} parent=0 // pred_check_branch
    %20 = sbr.rel (0) target = $region21
  $region20: #{_supcon_forward.3} parent=0 // pred_region
    _
  $region21: #{_supcon_forward.3} parent=0 // pred_fallthru
    _
  // Predicated region
  $region22: #{_supcon_forward.3} parent=0 // pred_check
    _
  $region23: #{_supcon_forward.3} parent=0 // pred_check_branch
    %22 = sbr.rel (0) target = $region25
  $region24: #{_supcon_forward.3} parent=0 // pred_region
    _
  $region25: #{_supcon_forward.3} parent=0 // pred_fallthru
    _
  %p24 = scmp.eq.s32.totalorder 0, 0
  // Predicated region
  $region26: #{_supcon_forward.3} parent=0 // pred_check
    %p25 = pneg %p24
  $region27: #{_supcon_forward.3} parent=0 // pred_check_branch
    %27 = sbr.rel (%p25) target = $region29
  $region28: #{_supcon_forward.3} parent=0 // pred_region
    %vm28 = vcmask 7168
    %29 = vst.msk [vmem:[#allocation2] sm:$0xff] %vm28, -1e+09
    %30 = vst.msk [vmem:[#allocation2 + $0x8] sm:$0xff] %vm28, -1e+09
    %31 = vst.msk [vmem:[#allocation2 + $0x10] sm:$0xff] %vm28, -1e+09
    %32 = vst.msk [vmem:[#allocation2 + $0x18] sm:$0xff] %vm28, -1e+09
    %33 = vst.msk [vmem:[#allocation3] sm:$0xff] %vm28, 0.0
    %34 = vst.msk [vmem:[#allocation3 + $0x8] sm:$0xff] %vm28, 0.0
    %35 = vst.msk [vmem:[#allocation3 + $0x10] sm:$0xff] %vm28, 0.0
    %36 = vst.msk [vmem:[#allocation3 + $0x18] sm:$0xff] %vm28, 0.0
    %37 = vst.msk [vmem:[#allocation4] sm:$0xff] %vm28, 0.0
    %38 = vst.msk [vmem:[#allocation4 + $0x8] sm:$0xff] %vm28, 0.0
    %39 = vst.msk [vmem:[#allocation4 + $0x10] sm:$0xff] %vm28, 0.0
    %40 = vst.msk [vmem:[#allocation4 + $0x18] sm:$0xff] %vm28, 0.0
    %41 = vst.msk [vmem:[#allocation5] sm:$0xff] %vm28, 0.0
    %42 = vst.msk [vmem:[#allocation5 + $0x8] sm:$0xff] %vm28, 0.0
    %43 = vst.msk [vmem:[#allocation5 + $0x10] sm:$0xff] %vm28, 0.0
    %44 = vst.msk [vmem:[#allocation5 + $0x18] sm:$0xff] %vm28, 0.0
  $region29: #{_supcon_forward.3} parent=0 // pred_fallthru
    _
  %v45 = vld [vmem:[%s0] sm:$0xf]
  %v46 = vld [vmem:[%s0 + $0x4] sm:$0xf]
  %v47 = vld [vmem:[%s0 + $0x8] sm:$0xf]
  %v48 = vld [vmem:[%s0 + $0xc] sm:$0xf]
  %v49 = vld [vmem:[%s1] sm:$0xf]
  %v50 = vld [vmem:[%s1 + $0x4] sm:$0xf]
  %v51 = vld [vmem:[%s1 + $0x8] sm:$0xf]
  %v52 = vld [vmem:[%s1 + $0xc] sm:$0xf]
  %v53 = vld [vmem:[%s1 + $0x10] sm:$0xf]
  %v54 = vld [vmem:[%s1 + $0x14] sm:$0xf]
  %v55 = vld [vmem:[%s1 + $0x18] sm:$0xf]
  %v56 = vld [vmem:[%s1 + $0x1c] sm:$0xf]
  %v57 = vld [vmem:[%s1 + $0x20] sm:$0xf]
  %v58 = vld [vmem:[%s1 + $0x24] sm:$0xf]
  %v59 = vld [vmem:[%s1 + $0x28] sm:$0xf]
  %v60 = vld [vmem:[%s1 + $0x2c] sm:$0xf]
  %v61 = vld [vmem:[%s1 + $0x30] sm:$0xf]
  %v62 = vld [vmem:[%s1 + $0x34] sm:$0xf]
  %v63 = vld [vmem:[%s1 + $0x38] sm:$0xf]
  %v64 = vld [vmem:[%s1 + $0x3c] sm:$0xf]
  %v69 = vunpack.c.l.b16 %v45
  %v70 = vunpack.c.l.b16 %v46
  %v71 = vunpack.c.l.b16 %v47
  %v72 = vunpack.c.l.b16 %v48
  %v73 = vpack.c.b16 %v70, %v69
  %v74 = vpack.c.b16 %v72, %v71
  %v93 = vunpack.c.l.b16 %v49
  %v94 = vunpack.c.l.b16 %v50
  %v95 = vunpack.c.l.b16 %v51
  %v96 = vunpack.c.l.b16 %v52
  %v97 = vunpack.c.l.b16 %v53
  %v98 = vunpack.c.l.b16 %v54
  %v99 = vunpack.c.l.b16 %v55
  %v100 = vunpack.c.l.b16 %v56
  %v101 = vunpack.c.l.b16 %v57
  %v102 = vunpack.c.l.b16 %v58
  %v103 = vunpack.c.l.b16 %v59
  %v104 = vunpack.c.l.b16 %v60
  %v105 = vunpack.c.l.b16 %v61
  %v106 = vunpack.c.l.b16 %v62
  %v107 = vunpack.c.l.b16 %v63
  %v108 = vunpack.c.l.b16 %v64
  %v109 = vpack.c.b16 %v94, %v93
  %v110 = vpack.c.b16 %v96, %v95
  %v111 = vpack.c.b16 %v98, %v97
  %v112 = vpack.c.b16 %v100, %v99
  %v113 = vpack.c.b16 %v102, %v101
  %v114 = vpack.c.b16 %v104, %v103
  %v115 = vpack.c.b16 %v106, %v105
  %v116 = vpack.c.b16 %v108, %v107
  %125 = vmatprep.subr.bf16.mxu0 0
  %126 = vmatpush1.bf16.msra.mxu0 %v116
  %127 = vmatprep.subr.bf16.mxu0 0
  %128 = vmatpush1.bf16.msra.mxu0 %v115
  %129 = vmatprep.subr.bf16.mxu0 0
  %130 = vmatpush1.bf16.msra.mxu0 %v114
  %131 = vmatprep.subr.bf16.mxu0 0
  %132 = vmatpush1.bf16.msra.mxu0 %v113
  %133 = vmatprep.subr.bf16.mxu0 0
  %134 = vmatpush1.bf16.msra.mxu0 %v112
  %135 = vmatprep.subr.bf16.mxu0 0
  %136 = vmatpush1.bf16.msra.mxu0 %v111
  %137 = vmatprep.subr.bf16.mxu0 0
  %138 = vmatpush1.bf16.msra.mxu0 %v110
  %139 = vmatprep.subr.bf16.mxu0 0
  %140 = vmatpush1.bf16.msra.mxu0 %v109
  %141 = vmatprep.subr.bf16.mxu0 0
  %142 = vmatpush2.bf16.msra.mxu0 0
  %143 = vmatprep.subr.bf16.mxu0 0
  %144 = vmatpush2.bf16.msra.mxu0 0
  %145 = vmatprep.subr.bf16.mxu0 0
  %146 = vmatpush2.bf16.msra.mxu0 0
  %147 = vmatprep.subr.bf16.mxu0 0
  %148 = vmatpush2.bf16.msra.mxu0 0
  %149 = vmatprep.subr.bf16.mxu0 0
  %150 = vmatpush2.bf16.msra.mxu0 0
  %151 = vmatprep.subr.bf16.mxu0 0
  %152 = vmatpush2.bf16.msra.mxu0 0
  %153 = vmatprep.subr.bf16.mxu0 0
  %154 = vmatpush2.bf16.msra.mxu0 0
  %155 = vmatprep.subr.bf16.mxu0 0
  %156 = vmatpush2.bf16.msra.mxu0 0
  %157 = vmatprep.mubr.bf16.mxu0 0
  %158 = vmatmul.mubr.bf16.gmra.mxu0 %v73
  %v159 = vpop.f32.mrf.mxu0
  %v160 = vadd.f32 0.0, %v159
  %v161 = vpop.f32.mrf.mxu0
  %v162 = vpop.f32.mrf.mxu0
  %v163 = vadd.f32 0.0, %v162
  %v164 = vpop.f32.mrf.mxu0
  %165 = vmatprep.mubr.bf16.mxu0 0
  %166 = vmatmul.mubr.bf16.gmra.mxu0 %v74
  %v167 = vpop.f32.mrf.mxu0
  %v168 = vadd.f32 0.0, %v167
  %v169 = vpop.f32.mrf.mxu0
  %v170 = vpop.f32.mrf.mxu0
  %v171 = vadd.f32 0.0, %v170
  %v172 = vpop.f32.mrf.mxu0
  %173 = vdwg.mxu0
  %s174 = smul.u32 0, 32
  %v175 = vlaneseq
  %v176 = vshrl.u32 %v175, 7
  %v177 = vadd.s32 %v176, 8
  %v178 = vadd.s32 %v176, 16
  %v179 = vadd.s32 %v176, 24
  %v180 = vstv %s174
  %v181 = vadd.s32 %v180, %v176
  %v182 = vadd.s32 %v180, %v177
  %v183 = vadd.s32 %v180, %v178
  %v184 = vadd.s32 %v180, %v179
  %s185 = smul.u32 0, 32
  %v186 = vlaneseq
  %v187 = vand.u32 %v186, 127
  %v188 = vstv %s185
  %v189 = vadd.s32 %v188, %v187
  %vm190 = vcmp.eq.s32.totalorder %v181, %v189
  %vm191 = vcmp.eq.s32.totalorder %v182, %v189
  %vm192 = vcmp.eq.s32.totalorder %v183, %v189
  %vm193 = vcmp.eq.s32.totalorder %v184, %v189
  %v194 = vld [vmem:[%s5] sm:$0x1]
  %vm195 = vcmp.gt.f32.partialorder %v194, 0.5
  %vm196 = vmxor %vm195, 1
  %v197 = vsel %vm196, 1, 0
  %v198 = vlaneseq
  %v199 = vshrl.u32 %v198, 7
  %v200 = vsub.s32 0, %v199
  %v201 = vrot.slane %v197, %v200
  %vm202 = vcmp.eq.s32.totalorder %v201, 1
  %vm203 = vmor %vm190, %vm202
  %vm204 = vmor %vm191, %vm202
  %vm205 = vmor %vm192, %vm202
  %vm206 = vmor %vm193, %vm202
  %v207 = vsel %vm203, -1e+30, %v160
  %v208 = vsel %vm204, -1e+30, %v163
  %v209 = vsel %vm205, -1e+30, %v168
  %v210 = vsel %vm206, -1e+30, %v171
  %v211 = vld [vmem:[%s2] sm:$0xff]
  %v212 = vld [vmem:[%s2 + $0x8] sm:$0xff]
  %v213 = vld [vmem:[%s2 + $0x10] sm:$0xff]
  %v214 = vld [vmem:[%s2 + $0x18] sm:$0xff]
  %v215 = vld [vmem:[%s3] sm:$0x1]
  %216 = vset.pattern.permute.xlu0 0
  %217 = vperm.xlu0 %216, %v211
  %v218 = vpop.permute.xlu0 %217
  %219 = vset.pattern.permute.xlu0 0
  %220 = vperm.xlu0 %219, %v212
  %v221 = vpop.permute.xlu0 %220
  %222 = vset.pattern.permute.xlu0 0
  %223 = vperm.xlu0 %222, %v213
  %v224 = vpop.permute.xlu0 %223
  %225 = vset.pattern.permute.xlu0 0
  %226 = vperm.xlu0 %225, %v214
  %v227 = vpop.permute.xlu0 %226
  %v228 = vlaneseq
  %v229 = vshrl.u32 %v228, 7
  %v230 = vsub.s32 0, %v229
  %v231 = vrot.slane %v215, %v230
  %vm232 = vcmp.eq.s32.totalorder %v218, %v231
  %vm233 = vcmp.eq.s32.totalorder %v221, %v231
  %vm234 = vcmp.eq.s32.totalorder %v224, %v231
  %vm235 = vcmp.eq.s32.totalorder %v227, %v231
  %vm236 = vmxor %vm190, 1
  %vm237 = vmxor %vm191, 1
  %vm238 = vmxor %vm192, 1
  %vm239 = vmxor %vm193, 1
  %vm240 = vmand %vm232, %vm236
  %vm241 = vmand %vm233, %vm237
  %vm242 = vmand %vm234, %vm238
  %vm243 = vmand %vm235, %vm239
  %v244 = vsel %vm195, 1, 0
  %v245 = vlaneseq
  %v246 = vshrl.u32 %v245, 7
  %v247 = vsub.s32 0, %v246
  %v248 = vrot.slane %v244, %v247
  %vm249 = vcmp.eq.s32.totalorder %v248, 1
  %vm250 = vmand %vm240, %vm249
  %vm251 = vmand %vm241, %vm249
  %vm252 = vmand %vm242, %vm249
  %vm253 = vmand %vm243, %vm249
  %v254 = vsel %vm250, 1, 0
  %v255 = vsel %vm251, 1, 0
  %v256 = vsel %vm252, 1, 0
  %v257 = vsel %vm253, 1, 0
  %v258 = vcvt.s32.f32 %v254
  %v259 = vcvt.s32.f32 %v255
  %v260 = vcvt.s32.f32 %v256
  %v261 = vcvt.s32.f32 %v257
  %v262 = vld [vmem:[#allocation2] sm:$0xff]
  %v263 = vld [vmem:[#allocation2 + $0x8] sm:$0xff]
  %v264 = vld [vmem:[#allocation2 + $0x10] sm:$0xff]
  %v265 = vld [vmem:[#allocation2 + $0x18] sm:$0xff]
  %vm266 = vcmask 261120
  %v267 = vsel %vm266, %v207, -inf
  %268 = vmax.xlane.f32.xlu0 %v267
  %v269 = vpop.xlane.xlu0 %268
  %v270 = vsel %vm266, %v208, -inf
  %271 = vmax.xlane.f32.xlu0 %v270
  %v272 = vpop.xlane.xlu0 %271
  %v273 = vsel %vm266, %v209, -inf
  %274 = vmax.xlane.f32.xlu0 %v273
  %v275 = vpop.xlane.xlu0 %274
  %v276 = vsel %vm266, %v210, -inf
  %277 = vmax.xlane.f32.xlu0 %v276
  %v278 = vpop.xlane.xlu0 %277
  %v279 = vmax.f32 %v262, %v269
  %v280 = vmax.f32 %v263, %v272
  %v281 = vmax.f32 %v264, %v275
  %v282 = vmax.f32 %v265, %v278
  %v283 = vsub.f32 %v262, %v279
  %v284 = vsub.f32 %v263, %v280
  %v285 = vsub.f32 %v264, %v281
  %v286 = vsub.f32 %v265, %v282
  %v287 = vmul.f32 %v283, 1.442695
  %v288 = vpow.pop %v287
  %v289 = vmul.f32 %v284, 1.442695
  %v290 = vpow.pop %v289
  %v291 = vmul.f32 %v285, 1.442695
  %v292 = vpow.pop %v291
  %v293 = vmul.f32 %v286, 1.442695
  %v294 = vpow.pop %v293
  %v295 = vld [vmem:[#allocation3] sm:$0xff]
  %v296 = vld [vmem:[#allocation3 + $0x8] sm:$0xff]
  %v297 = vld [vmem:[#allocation3 + $0x10] sm:$0xff]
  %v298 = vld [vmem:[#allocation3 + $0x18] sm:$0xff]
  %v299 = vmul.f32 %v288, %v295
  %v300 = vmul.f32 %v290, %v296
  %v301 = vmul.f32 %v292, %v297
  %v302 = vmul.f32 %v294, %v298
  %304 = vset.pattern.permute.xlu0 0
  %305 = vperm.xlu0 %304, %v279
  %v306 = vpop.permute.xlu0 %305
  %309 = vset.pattern.permute.xlu0 0
  %310 = vperm.xlu0 %309, %v280
  %v311 = vpop.permute.xlu0 %310
  %314 = vset.pattern.permute.xlu0 0
  %315 = vperm.xlu0 %314, %v281
  %v316 = vpop.permute.xlu0 %315
  %319 = vset.pattern.permute.xlu0 0
  %320 = vperm.xlu0 %319, %v282
  %v321 = vpop.permute.xlu0 %320
  %v323 = vsub.f32 %v207, %v306
  %v324 = vsub.f32 %v208, %v311
  %v325 = vsub.f32 %v209, %v316
  %v326 = vsub.f32 %v210, %v321
  %v327 = vmul.f32 %v323, 1.442695
  %v328 = vpow.pop %v327
  %v329 = vmul.f32 %v324, 1.442695
  %v330 = vpow.pop %v329
  %v331 = vmul.f32 %v325, 1.442695
  %v332 = vpow.pop %v331
  %v333 = vmul.f32 %v326, 1.442695
  %v334 = vpow.pop %v333
  %v335 = vsel %vm266, %v328, 0.0
  %336 = vadd.xlane.f32.xlu0 %v335
  %v337 = vpop.xlane.xlu0 %336
  %v338 = vsel %vm266, %v330, 0.0
  %339 = vadd.xlane.f32.xlu0 %v338
  %v340 = vpop.xlane.xlu0 %339
  %v341 = vsel %vm266, %v332, 0.0
  %342 = vadd.xlane.f32.xlu0 %v341
  %v343 = vpop.xlane.xlu0 %342
  %v344 = vsel %vm266, %v334, 0.0
  %345 = vadd.xlane.f32.xlu0 %v344
  %v346 = vpop.xlane.xlu0 %345
  %v347 = vadd.f32 %v299, %v337
  %v348 = vadd.f32 %v300, %v340
  %v349 = vadd.f32 %v301, %v343
  %v350 = vadd.f32 %v302, %v346
  %vm351 = vcmask 7168
  %352 = vst.msk [vmem:[#allocation3] sm:$0xff] %vm351, %v347
  %353 = vst.msk [vmem:[#allocation3 + $0x8] sm:$0xff] %vm351, %v348
  %354 = vst.msk [vmem:[#allocation3 + $0x10] sm:$0xff] %vm351, %v349
  %355 = vst.msk [vmem:[#allocation3 + $0x18] sm:$0xff] %vm351, %v350
  %v356 = vld [vmem:[#allocation4] sm:$0xff]
  %v357 = vld [vmem:[#allocation4 + $0x8] sm:$0xff]
  %v358 = vld [vmem:[#allocation4 + $0x10] sm:$0xff]
  %v359 = vld [vmem:[#allocation4 + $0x18] sm:$0xff]
  %v360 = vmul.f32 %v258, %v207
  %v361 = vmul.f32 %v259, %v208
  %v362 = vmul.f32 %v260, %v209
  %v363 = vmul.f32 %v261, %v210
  %v364 = vsel %vm266, %v360, 0.0
  %365 = vadd.xlane.f32.xlu0 %v364
  %v366 = vpop.xlane.xlu0 %365
  %v367 = vsel %vm266, %v361, 0.0
  %368 = vadd.xlane.f32.xlu0 %v367
  %v369 = vpop.xlane.xlu0 %368
  %v370 = vsel %vm266, %v362, 0.0
  %371 = vadd.xlane.f32.xlu0 %v370
  %v372 = vpop.xlane.xlu0 %371
  %v373 = vsel %vm266, %v363, 0.0
  %374 = vadd.xlane.f32.xlu0 %v373
  %v375 = vpop.xlane.xlu0 %374
  %v376 = vadd.f32 %v356, %v366
  %v377 = vadd.f32 %v357, %v369
  %v378 = vadd.f32 %v358, %v372
  %v379 = vadd.f32 %v359, %v375
  %380 = vst.msk [vmem:[#allocation4] sm:$0xff] %vm351, %v376
  %381 = vst.msk [vmem:[#allocation4 + $0x8] sm:$0xff] %vm351, %v377
  %382 = vst.msk [vmem:[#allocation4 + $0x10] sm:$0xff] %vm351, %v378
  %383 = vst.msk [vmem:[#allocation4 + $0x18] sm:$0xff] %vm351, %v379
  %v384 = vld [vmem:[#allocation5] sm:$0xff]
  %v385 = vld [vmem:[#allocation5 + $0x8] sm:$0xff]
  %v386 = vld [vmem:[#allocation5 + $0x10] sm:$0xff]
  %v387 = vld [vmem:[#allocation5 + $0x18] sm:$0xff]
  %v388 = vsel %vm266, %v258, 0.0
  %389 = vadd.xlane.f32.xlu0 %v388
  %v390 = vpop.xlane.xlu0 %389
  %v391 = vsel %vm266, %v259, 0.0
  %392 = vadd.xlane.f32.xlu0 %v391
  %v393 = vpop.xlane.xlu0 %392
  %v394 = vsel %vm266, %v260, 0.0
  %395 = vadd.xlane.f32.xlu0 %v394
  %v396 = vpop.xlane.xlu0 %395
  %v397 = vsel %vm266, %v261, 0.0
  %398 = vadd.xlane.f32.xlu0 %v397
  %v399 = vpop.xlane.xlu0 %398
  %v400 = vadd.f32 %v384, %v390
  %v401 = vadd.f32 %v385, %v393
  %v402 = vadd.f32 %v386, %v396
  %v403 = vadd.f32 %v387, %v399
  %404 = vst.msk [vmem:[#allocation5] sm:$0xff] %vm351, %v400
  %405 = vst.msk [vmem:[#allocation5 + $0x8] sm:$0xff] %vm351, %v401
  %406 = vst.msk [vmem:[#allocation5 + $0x10] sm:$0xff] %vm351, %v402
  %407 = vst.msk [vmem:[#allocation5 + $0x18] sm:$0xff] %vm351, %v403
  %408 = vst.msk [vmem:[#allocation2] sm:$0xff] %vm351, %v279
  %409 = vst.msk [vmem:[#allocation2 + $0x8] sm:$0xff] %vm351, %v280
  %410 = vst.msk [vmem:[#allocation2 + $0x10] sm:$0xff] %vm351, %v281
  %411 = vst.msk [vmem:[#allocation2 + $0x18] sm:$0xff] %vm351, %v282
  // Predicated region
  $region30: #{_supcon_forward.3} parent=0 // pred_check
    %p412 = pneg %p24
  $region31: #{_supcon_forward.3} parent=0 // pred_check_branch
    %414 = sbr.rel (%p412) target = $region33
  $region32: #{_supcon_forward.3} parent=0 // pred_region
    %v415 = vld [vmem:[#allocation5] sm:$0xff]
    %v416 = vld [vmem:[#allocation5 + $0x8] sm:$0xff]
    %v417 = vld [vmem:[#allocation5 + $0x10] sm:$0xff]
    %v418 = vld [vmem:[#allocation5 + $0x18] sm:$0xff]
    %v419 = vmax.f32 %v415, 1.0
    %v420 = vmax.f32 %v416, 1.0
    %v421 = vmax.f32 %v417, 1.0
    %v422 = vmax.f32 %v418, 1.0
    %v423 = vld [vmem:[#allocation2] sm:$0xff]
    %v424 = vld [vmem:[#allocation2 + $0x8] sm:$0xff]
    %v425 = vld [vmem:[#allocation2 + $0x10] sm:$0xff]
    %v426 = vld [vmem:[#allocation2 + $0x18] sm:$0xff]
    %v427 = vld [vmem:[#allocation3] sm:$0xff]
    %v428 = vld [vmem:[#allocation3 + $0x8] sm:$0xff]
    %v429 = vld [vmem:[#allocation3 + $0x10] sm:$0xff]
    %v430 = vld [vmem:[#allocation3 + $0x18] sm:$0xff]
    %v431 = vlog2.pop %v427
    %v432 = vmul.f32 %v431, 0.6931472
    %v433 = vlog2.pop %v428
    %v434 = vmul.f32 %v433, 0.6931472
    %v435 = vlog2.pop %v429
    %v436 = vmul.f32 %v435, 0.6931472
    %v437 = vlog2.pop %v430
    %v438 = vmul.f32 %v437, 0.6931472
    %v439 = vadd.f32 %v423, %v432
    %v440 = vadd.f32 %v424, %v434
    %v441 = vadd.f32 %v425, %v436
    %v442 = vadd.f32 %v426, %v438
    %v443 = vld [vmem:[#allocation4] sm:$0xff]
    %v444 = vld [vmem:[#allocation4 + $0x8] sm:$0xff]
    %v445 = vld [vmem:[#allocation4 + $0x10] sm:$0xff]
    %v446 = vld [vmem:[#allocation4 + $0x18] sm:$0xff]
    %v447 = vmul.f32 %v415, %v439
    %v448 = vmul.f32 %v416, %v440
    %v449 = vmul.f32 %v417, %v441
    %v450 = vmul.f32 %v418, %v442
    %v451 = vsub.f32 %v443, %v447
    %v452 = vsub.f32 %v444, %v448
    %v453 = vsub.f32 %v445, %v449
    %v454 = vsub.f32 %v446, %v450
    %v455 = vrcp.pop %v419
    %v456 = vrcp.pop %v420
    %v457 = vrcp.pop %v421
    %v458 = vrcp.pop %v422
    %v459 = vmul.f32 %v451, %v455
    %v460 = vmul.f32 %v452, %v456
    %v461 = vmul.f32 %v453, %v457
    %v462 = vmul.f32 %v454, %v458
    %v463 = vmul.f32 %v459, -1.0
    %v464 = vmul.f32 %v460, -1.0
    %v465 = vmul.f32 %v461, -1.0
    %v466 = vmul.f32 %v462, -1.0
    %v467 = vld [vmem:[%s4] sm:$0xff]
    %v468 = vld [vmem:[%s4 + $0x8] sm:$0xff]
    %v469 = vld [vmem:[%s4 + $0x10] sm:$0xff]
    %v470 = vld [vmem:[%s4 + $0x18] sm:$0xff]
    %v471 = vmul.f32 %v463, %v467
    %v472 = vmul.f32 %v464, %v468
    %v473 = vmul.f32 %v465, %v469
    %v474 = vmul.f32 %v466, %v470
    %475 = vst.msk [vmem:[%s6] sm:$0xff] %vm351, %v471
    %476 = vst.msk [vmem:[%s6 + $0x8] sm:$0xff] %vm351, %v472
    %477 = vst.msk [vmem:[%s6 + $0x10] sm:$0xff] %vm351, %v473
    %478 = vst.msk [vmem:[%s6 + $0x18] sm:$0xff] %vm351, %v474
  $region33: #{_supcon_forward.3} parent=0 // pred_fallthru
    _
  // Predicated region
  $region34: #{_supcon_forward.3} parent=0 // pred_check
    _
  $region35: #{_supcon_forward.3} parent=0 // pred_check_branch
    %480 = sbr.rel (0) target = $region37
  $region36: #{_supcon_forward.3} parent=0 // pred_region
    _
  $region37: #{_supcon_forward.3} parent=0 // pred_fallthru
    _
  // Predicated region
  $region38: #{_supcon_forward.3} parent=0 // pred_check
    _
  $region39: #{_supcon_forward.3} parent=0 // pred_check_branch
    %482 = sbr.rel (0) target = $region41
  $region40: #{_supcon_forward.3} parent=0 // pred_region
    _
  $region41: #{_supcon_forward.3} parent=0 // pred_fallthru
    _

// kernel: _supcon_forward.2
$region0: #{_supcon_forward.2}
  #allocation0 [shape = 'u32[]', space=smem, size = 0x4, offset = 0x4, fixed_abs, tag = 'smem constant byte address 0x4 - core index']
  #allocation1 [shape = 'u32[144,128]{1,0:T(1,128)}', space=vmem, size = 0x12000, scoped, tag = 'internal scratch']
  %s0 = inlined_call_operand.vmem [shape: bf16[16,128], index: 0, kind: input, shape index: {}]
  %s1 = inlined_call_operand.vmem [shape: bf16[16,128], index: 1, kind: input, shape index: {}]
  %s2 = inlined_call_operand.vmem [shape: bf16[128,128], index: 2, kind: input, shape index: {}]
  %s3 = inlined_call_operand.vmem [shape: f32[1,128], index: 3, kind: input, shape index: {}]
  %s4 = inlined_call_operand.vmem [shape: bf16[128,128], index: 4, kind: input, shape index: {}]
  %s5 = inlined_call_operand.vmem [shape: f32[1,128], index: 5, kind: input, shape index: {}]
  %s6 = inlined_call_operand.vmem [shape: bf16[128,128], index: 6, kind: input, shape index: {}]
  %s7 = inlined_call_operand.vmem [shape: f32[1,128], index: 7, kind: input, shape index: {}]
  %s8 = inlined_call_operand.vmem [shape: bf16[128,128], index: 8, kind: input, shape index: {}]
  %s9 = inlined_call_operand.vmem [shape: f32[1,128], index: 9, kind: input, shape index: {}]
  %s10 = inlined_call_operand.vmem [shape: bf16[128,128], index: 10, kind: input, shape index: {}]
  %s11 = inlined_call_operand.vmem [shape: f32[1,128], index: 11, kind: input, shape index: {}]
  %s12 = inlined_call_operand.vmem [shape: bf16[128,128], index: 12, kind: input, shape index: {}]
  %s13 = inlined_call_operand.vmem [shape: f32[1,128], index: 13, kind: input, shape index: {}]
  %s14 = inlined_call_operand.vmem [shape: bf16[128,128], index: 14, kind: input, shape index: {}]
  %s15 = inlined_call_operand.vmem [shape: f32[1,128], index: 15, kind: input, shape index: {}]
  %s16 = inlined_call_operand.vmem [shape: bf16[128,128], index: 16, kind: input, shape index: {}]
  %s17 = inlined_call_operand.vmem [shape: f32[1,128], index: 17, kind: input, shape index: {}]
  %s18 = inlined_call_operand.vmem [shape: bf16[128,128], index: 18, kind: input, shape index: {}]
  %s19 = inlined_call_operand.vmem [shape: f32[1,128], index: 19, kind: input, shape index: {}]
  %s20 = inlined_call_operand.vmem [shape: bf16[128,128], index: 20, kind: input, shape index: {}]
  %s21 = inlined_call_operand.vmem [shape: f32[1,128], index: 21, kind: input, shape index: {}]
  %s22 = inlined_call_operand.vmem [shape: bf16[2,16,128], index: 22, kind: output, shape index: {}]
  %s23 = sld [smem:[#allocation0]]
  $region98: #{_supcon_forward.2} parent=0
    _
  %s25 = ssub.s32 1, %s23
  %s26 = scalar_select 0, %s25, %s23
  // Predicated region
  $region2: #{_supcon_forward.2} parent=0 // pred_check
    _
  $region3: #{_supcon_forward.2} parent=0 // pred_check_branch
    %28 = sbr.rel (0) target = $region5
  $region4: #{_supcon_forward.2} parent=0 // pred_region
    _
  $region5: #{_supcon_forward.2} parent=0 // pred_fallthru
    _
  // Predicated region
  $region6: #{_supcon_forward.2} parent=0 // pred_check
    _
  $region7: #{_supcon_forward.2} parent=0 // pred_check_branch
    %30 = sbr.rel (0) target = $region9
  $region8: #{_supcon_forward.2} parent=0 // pred_region
    _
  $region9: #{_supcon_forward.2} parent=0 // pred_fallthru
    _
  // Predicated region
  $region10: #{_supcon_forward.2} parent=0 // pred_check
    _
  $region11: #{_supcon_forward.2} parent=0 // pred_check_branch
    %32 = sbr.rel (0) target = $region13
  $region12: #{_supcon_forward.2} parent=0 // pred_region
    _
  $region13: #{_supcon_forward.2} parent=0 // pred_fallthru
    _
  // Predicated region
  $region14: #{_supcon_forward.2} parent=0 // pred_check
    _
  $region15: #{_supcon_forward.2} parent=0 // pred_check_branch
    %34 = sbr.rel (0) target = $region17
  $region16: #{_supcon_forward.2} parent=0 // pred_region
    _
  $region17: #{_supcon_forward.2} parent=0 // pred_fallthru
    _
  // Predicated region
  $region18: #{_supcon_forward.2} parent=0 // pred_check
    _
  $region19: #{_supcon_forward.2} parent=0 // pred_check_branch
    %36 = sbr.rel (0) target = $region21
  $region20: #{_supcon_forward.2} parent=0 // pred_region
    _
  $region21: #{_supcon_forward.2} parent=0 // pred_fallthru
    _
  // Predicated region
  $region22: #{_supcon_forward.2} parent=0 // pred_check
    _
  $region23: #{_supcon_forward.2} parent=0 // pred_check_branch
    %38 = sbr.rel (0) target = $region25
  $region24: #{_supcon_forward.2} parent=0 // pred_region
    _
  $region25: #{_supcon_forward.2} parent=0 // pred_fallthru
    _
  // Predicated region
  $region26: #{_supcon_forward.2} parent=0 // pred_check
    _
  $region27: #{_supcon_forward.2} parent=0 // pred_check_branch
    %40 = sbr.rel (0) target = $region29
  $region28: #{_supcon_forward.2} parent=0 // pred_region
    _
  $region29: #{_supcon_forward.2} parent=0 // pred_fallthru
    _
  // Predicated region
  $region30: #{_supcon_forward.2} parent=0 // pred_check
    _
  $region31: #{_supcon_forward.2} parent=0 // pred_check_branch
    %42 = sbr.rel (0) target = $region33
  $region32: #{_supcon_forward.2} parent=0 // pred_region
    _
  $region33: #{_supcon_forward.2} parent=0 // pred_fallthru
    _
  // Predicated region
  $region34: #{_supcon_forward.2} parent=0 // pred_check
    _
  $region35: #{_supcon_forward.2} parent=0 // pred_check_branch
    %44 = sbr.rel (0) target = $region37
  $region36: #{_supcon_forward.2} parent=0 // pred_region
    _
  $region37: #{_supcon_forward.2} parent=0 // pred_fallthru
    _
  // Predicated region
  $region38: #{_supcon_forward.2} parent=0 // pred_check
    _
  $region39: #{_supcon_forward.2} parent=0 // pred_check_branch
    %46 = sbr.rel (0) target = $region41
  $region40: #{_supcon_forward.2} parent=0 // pred_region
    _
  $region41: #{_supcon_forward.2} parent=0 // pred_fallthru
    _
  // Predicated region
  $region42: #{_supcon_forward.2} parent=0 // pred_check
    _
  $region43: #{_supcon_forward.2} parent=0 // pred_check_branch
    %48 = sbr.rel (0) target = $region45
  $region44: #{_supcon_forward.2} parent=0 // pred_region
    _
  $region45: #{_supcon_forward.2} parent=0 // pred_fallthru
    _
  // Predicated region
  $region46: #{_supcon_forward.2} parent=0 // pred_check
    _
  $region47: #{_supcon_forward.2} parent=0 // pred_check_branch
    %50 = sbr.rel (0) target = $region49
  $region48: #{_supcon_forward.2} parent=0 // pred_region
    _
  $region49: #{_supcon_forward.2} parent=0 // pred_fallthru
    _
  // Predicated region
  $region50: #{_supcon_forward.2} parent=0 // pred_check
    _
  $region51: #{_supcon_forward.2} parent=0 // pred_check_branch
    %52 = sbr.rel (0) target = $region53
  $region52: #{_supcon_forward.2} parent=0 // pred_region
    _
  $region53: #{_supcon_forward.2} parent=0 // pred_fallthru
    _
  // Predicated region
  $region54: #{_supcon_forward.2} parent=0 // pred_check
    _
  $region55: #{_supcon_forward.2} parent=0 // pred_check_branch
    %54 = sbr.rel (0) target = $region57
  $region56: #{_supcon_forward.2} parent=0 // pred_region
    _
  $region57: #{_supcon_forward.2} parent=0 // pred_fallthru
    _
  // Predicated region
  $region58: #{_supcon_forward.2} parent=0 // pred_check
    _
  $region59: #{_supcon_forward.2} parent=0 // pred_check_branch
    %56 = sbr.rel (0) target = $region61
  $region60: #{_supcon_forward.2} parent=0 // pred_region
    _
  $region61: #{_supcon_forward.2} parent=0 // pred_fallthru
    _
  // Predicated region
  $region62: #{_supcon_forward.2} parent=0 // pred_check
    _
  $region63: #{_supcon_forward.2} parent=0 // pred_check_branch
    %58 = sbr.rel (0) target = $region65
  $region64: #{_supcon_forward.2} parent=0 // pred_region
    _
  $region65: #{_supcon_forward.2} parent=0 // pred_fallthru
    _
  // Predicated region
  $region66: #{_supcon_forward.2} parent=0 // pred_check
    _
  $region67: #{_supcon_forward.2} parent=0 // pred_check_branch
    %60 = sbr.rel (0) target = $region69
  $region68: #{_supcon_forward.2} parent=0 // pred_region
    _
  $region69: #{_supcon_forward.2} parent=0 // pred_fallthru
    _
  // Predicated region
  $region70: #{_supcon_forward.2} parent=0 // pred_check
    _
  $region71: #{_supcon_forward.2} parent=0 // pred_check_branch
    %62 = sbr.rel (0) target = $region73
  $region72: #{_supcon_forward.2} parent=0 // pred_region
    _
  $region73: #{_supcon_forward.2} parent=0 // pred_fallthru
    _
  // Predicated region
  $region74: #{_supcon_forward.2} parent=0 // pred_check
    _
  $region75: #{_supcon_forward.2} parent=0 // pred_check_branch
    %64 = sbr.rel (0) target = $region77
  $region76: #{_supcon_forward.2} parent=0 // pred_region
    _
  $region77: #{_supcon_forward.2} parent=0 // pred_fallthru
    _
  // Predicated region
  $region78: #{_supcon_forward.2} parent=0 // pred_check
    _
  $region79: #{_supcon_forward.2} parent=0 // pred_check_branch
    %66 = sbr.rel (0) target = $region81
  $region80: #{_supcon_forward.2} parent=0 // pred_region
    _
  $region81: #{_supcon_forward.2} parent=0 // pred_fallthru
    _
  // Predicated region
  $region82: #{_supcon_forward.2} parent=0 // pred_check
    _
  $region83: #{_supcon_forward.2} parent=0 // pred_check_branch
    %68 = sbr.rel (0) target = $region85
  $region84: #{_supcon_forward.2} parent=0 // pred_region
    _
  $region85: #{_supcon_forward.2} parent=0 // pred_fallthru
    _
  // Predicated region
  $region86: #{_supcon_forward.2} parent=0 // pred_check
    _
  $region87: #{_supcon_forward.2} parent=0 // pred_check_branch
    %70 = sbr.rel (0) target = $region89
  $region88: #{_supcon_forward.2} parent=0 // pred_region
    _
  $region89: #{_supcon_forward.2} parent=0 // pred_fallthru
    _
  %v72 = vld [vmem:[%s0] sm:$0xf]
  %v73 = vld [vmem:[%s0 + $0x4] sm:$0xf]
  %v74 = vld [vmem:[%s2] sm:$0xf]
  %v75 = vld [vmem:[%s2 + $0x4] sm:$0xf]
  %v76 = vld [vmem:[%s2 + $0x8] sm:$0xf]
  %v77 = vld [vmem:[%s2 + $0xc] sm:$0xf]
  %v78 = vld [vmem:[%s2 + $0x10] sm:$0xf]
  %v79 = vld [vmem:[%s2 + $0x14] sm:$0xf]
  %v80 = vld [vmem:[%s2 + $0x18] sm:$0xf]
  %v81 = vld [vmem:[%s2 + $0x1c] sm:$0xf]
  %v82 = vld [vmem:[%s2 + $0x20] sm:$0xf]
  %v83 = vld [vmem:[%s2 + $0x24] sm:$0xf]
  %v84 = vld [vmem:[%s2 + $0x28] sm:$0xf]
  %v85 = vld [vmem:[%s2 + $0x2c] sm:$0xf]
  %v86 = vld [vmem:[%s2 + $0x30] sm:$0xf]
  %v87 = vld [vmem:[%s2 + $0x34] sm:$0xf]
  %v88 = vld [vmem:[%s2 + $0x38] sm:$0xf]
  %v89 = vld [vmem:[%s2 + $0x3c] sm:$0xf]
  %v90 = vld [vmem:[%s3] sm:$0x1]
  %v92 = vlaneseq
  %v93 = vshrl.u32 %v92, 7
  %v94 = vsub.s32 0, %v93
  %v95 = vrot.slane %v90, %v94
  %v99 = vunpack.c.l.b16 %v72
  %v100 = vunpack.c.l.b16 %v73
  %v101 = vpack.c.b16 %v100, %v99
  %v119 = vunpack.c.l.b16 %v74
  %v120 = vunpack.c.l.b16 %v75
  %v121 = vunpack.c.l.b16 %v76
  %v122 = vunpack.c.l.b16 %v77
  %v123 = vunpack.c.l.b16 %v78
  %v124 = vunpack.c.l.b16 %v79
  %v125 = vunpack.c.l.b16 %v80
  %v126 = vunpack.c.l.b16 %v81
  %v127 = vunpack.c.l.b16 %v82
  %v128 = vunpack.c.l.b16 %v83
  %v129 = vunpack.c.l.b16 %v84
  %v130 = vunpack.c.l.b16 %v85
  %v131 = vunpack.c.l.b16 %v86
  %v132 = vunpack.c.l.b16 %v87
  %v133 = vunpack.c.l.b16 %v88
  %v134 = vunpack.c.l.b16 %v89
  %v135 = vpack.c.b16 %v120, %v119
  %v136 = vpack.c.b16 %v122, %v121
  %v137 = vpack.c.b16 %v124, %v123
  %v138 = vpack.c.b16 %v126, %v125
  %v139 = vpack.c.b16 %v128, %v127
  %v140 = vpack.c.b16 %v130, %v129
  %v141 = vpack.c.b16 %v132, %v131
  %v142 = vpack.c.b16 %v134, %v133
  %151 = vmatprep.subr.bf16.mxu0 0
  %152 = vmatpush1.bf16.msra.mxu0 %v142
  %153 = vmatprep.subr.bf16.mxu0 0
  %154 = vmatpush1.bf16.msra.mxu0 %v141
  %155 = vmatprep.subr.bf16.mxu0 0
  %156 = vmatpush1.bf16.msra.mxu0 %v140
  %157 = vmatprep.subr.bf16.mxu0 0
  %158 = vmatpush1.bf16.msra.mxu0 %v139
  %159 = vmatprep.subr.bf16.mxu0 0
  %160 = vmatpush1.bf16.msra.mxu0 %v138
  %161 = vmatprep.subr.bf16.mxu0 0
  %162 = vmatpush1.bf16.msra.mxu0 %v137
  %163 = vmatprep.subr.bf16.mxu0 0
  %164 = vmatpush1.bf16.msra.mxu0 %v136
  %165 = vmatprep.subr.bf16.mxu0 0
  %166 = vmatpush1.bf16.msra.mxu0 %v135
  %167 = vmatprep.subr.bf16.mxu0 0
  %168 = vmatpush2.bf16.msra.mxu0 0
  %169 = vmatprep.subr.bf16.mxu0 0
  %170 = vmatpush2.bf16.msra.mxu0 0
  %171 = vmatprep.subr.bf16.mxu0 0
  %172 = vmatpush2.bf16.msra.mxu0 0
  %173 = vmatprep.subr.bf16.mxu0 0
  %174 = vmatpush2.bf16.msra.mxu0 0
  %175 = vmatprep.subr.bf16.mxu0 0
  %176 = vmatpush2.bf16.msra.mxu0 0
  %177 = vmatprep.subr.bf16.mxu0 0
  %178 = vmatpush2.bf16.msra.mxu0 0
  %179 = vmatprep.subr.bf16.mxu0 0
  %180 = vmatpush2.bf16.msra.mxu0 0
  %181 = vmatprep.subr.bf16.mxu0 0
  %182 = vmatpush2.bf16.msra.mxu0 0
  %183 = vmatprep.mubr.bf16.mxu0 0
  %184 = vmatmul.mubr.bf16.gmra.mxu0 %v101
  %v185 = vpop.f32.mrf.mxu0
  %v186 = vadd.f32 %v95, %v185
  %v187 = vpop.f32.mrf.mxu0
  %v188 = vpop.f32.mrf.mxu0
  %v189 = vadd.f32 %v95, %v188
  %v190 = vpop.f32.mrf.mxu0
  %191 = vdwg.mxu0
  %v192 = vmax.f32 %v186, 0.0
  %v193 = vmax.f32 %v189, 0.0
  %v194 = vpack.c.bf16 %v193, %v192
  %v195 = vld [vmem:[%s4] sm:$0xf]
  %v196 = vld [vmem:[%s4 + $0x4] sm:$0xf]
  %v197 = vld [vmem:[%s4 + $0x8] sm:$0xf]
  %v198 = vld [vmem:[%s4 + $0xc] sm:$0xf]
  %v199 = vld [vmem:[%s4 + $0x10] sm:$0xf]
  %v200 = vld [vmem:[%s4 + $0x14] sm:$0xf]
  %v201 = vld [vmem:[%s4 + $0x18] sm:$0xf]
  %v202 = vld [vmem:[%s4 + $0x1c] sm:$0xf]
  %v203 = vld [vmem:[%s4 + $0x20] sm:$0xf]
  %v204 = vld [vmem:[%s4 + $0x24] sm:$0xf]
  %v205 = vld [vmem:[%s4 + $0x28] sm:$0xf]
  %v206 = vld [vmem:[%s4 + $0x2c] sm:$0xf]
  %v207 = vld [vmem:[%s4 + $0x30] sm:$0xf]
  %v208 = vld [vmem:[%s4 + $0x34] sm:$0xf]
  %v209 = vld [vmem:[%s4 + $0x38] sm:$0xf]
  %v210 = vld [vmem:[%s4 + $0x3c] sm:$0xf]
  %v211 = vld [vmem:[%s5] sm:$0x1]
  %v213 = vlaneseq
  %v214 = vshrl.u32 %v213, 7
  %v215 = vsub.s32 0, %v214
  %v216 = vrot.slane %v211, %v215
  %v234 = vunpack.c.l.b16 %v195
  %v235 = vunpack.c.l.b16 %v196
  %v236 = vunpack.c.l.b16 %v197
  %v237 = vunpack.c.l.b16 %v198
  %v238 = vunpack.c.l.b16 %v199
  %v239 = vunpack.c.l.b16 %v200
  %v240 = vunpack.c.l.b16 %v201
  %v241 = vunpack.c.l.b16 %v202
  %v242 = vunpack.c.l.b16 %v203
  %v243 = vunpack.c.l.b16 %v204
  %v244 = vunpack.c.l.b16 %v205
  %v245 = vunpack.c.l.b16 %v206
  %v246 = vunpack.c.l.b16 %v207
  %v247 = vunpack.c.l.b16 %v208
  %v248 = vunpack.c.l.b16 %v209
  %v249 = vunpack.c.l.b16 %v210
  %v250 = vpack.c.b16 %v235, %v234
  %v251 = vpack.c.b16 %v237, %v236
  %v252 = vpack.c.b16 %v239, %v238
  %v253 = vpack.c.b16 %v241, %v240
  %v254 = vpack.c.b16 %v243, %v242
  %v255 = vpack.c.b16 %v245, %v244
  %v256 = vpack.c.b16 %v247, %v246
  %v257 = vpack.c.b16 %v249, %v248
  %266 = vmatprep.subr.bf16.mxu0 0
  %267 = vmatpush1.bf16.msra.mxu0 %v257
  %268 = vmatprep.subr.bf16.mxu0 0
  %269 = vmatpush1.bf16.msra.mxu0 %v256
  %270 = vmatprep.subr.bf16.mxu0 0
  %271 = vmatpush1.bf16.msra.mxu0 %v255
  %272 = vmatprep.subr.bf16.mxu0 0
  %273 = vmatpush1.bf16.msra.mxu0 %v254
  %274 = vmatprep.subr.bf16.mxu0 0
  %275 = vmatpush1.bf16.msra.mxu0 %v253
  %276 = vmatprep.subr.bf16.mxu0 0
  %277 = vmatpush1.bf16.msra.mxu0 %v252
  %278 = vmatprep.subr.bf16.mxu0 0
  %279 = vmatpush1.bf16.msra.mxu0 %v251
  %280 = vmatprep.subr.bf16.mxu0 0
  %281 = vmatpush1.bf16.msra.mxu0 %v250
  %282 = vmatprep.subr.bf16.mxu0 0
  %283 = vmatpush2.bf16.msra.mxu0 0
  %284 = vmatprep.subr.bf16.mxu0 0
  %285 = vmatpush2.bf16.msra.mxu0 0
  %286 = vmatprep.subr.bf16.mxu0 0
  %287 = vmatpush2.bf16.msra.mxu0 0
  %288 = vmatprep.subr.bf16.mxu0 0
  %289 = vmatpush2.bf16.msra.mxu0 0
  %290 = vmatprep.subr.bf16.mxu0 0
  %291 = vmatpush2.bf16.msra.mxu0 0
  %292 = vmatprep.subr.bf16.mxu0 0
  %293 = vmatpush2.bf16.msra.mxu0 0
  %294 = vmatprep.subr.bf16.mxu0 0
  %295 = vmatpush2.bf16.msra.mxu0 0
  %296 = vmatprep.subr.bf16.mxu0 0
  %297 = vmatpush2.bf16.msra.mxu0 0
  %298 = vmatprep.mubr.bf16.mxu0 0
  %299 = vmatmul.mubr.bf16.gmra.mxu0 %v194
  %v300 = vpop.f32.mrf.mxu0
  %v301 = vadd.f32 %v216, %v300
  %v302 = vpop.f32.mrf.mxu0
  %v303 = vpop.f32.mrf.mxu0
  %v304 = vadd.f32 %v216, %v303
  %v305 = vpop.f32.mrf.mxu0
  %306 = vdwg.mxu0
  %v307 = vmax.f32 %v301, 0.0
  %v308 = vmax.f32 %v304, 0.0
  %v309 = vpack.c.bf16 %v308, %v307
  %v310 = vld [vmem:[%s6] sm:$0xf]
  %v311 = vld [vmem:[%s6 + $0x4] sm:$0xf]
  %v312 = vld [vmem:[%s6 + $0x8] sm:$0xf]
  %v313 = vld [vmem:[%s6 + $0xc] sm:$0xf]
  %v314 = vld [vmem:[%s6 + $0x10] sm:$0xf]
  %v315 = vld [vmem:[%s6 + $0x14] sm:$0xf]
  %v316 = vld [vmem:[%s6 + $0x18] sm:$0xf]
  %v317 = vld [vmem:[%s6 + $0x1c] sm:$0xf]
  %v318 = vld [vmem:[%s6 + $0x20] sm:$0xf]
  %v319 = vld [vmem:[%s6 + $0x24] sm:$0xf]
  %v320 = vld [vmem:[%s6 + $0x28] sm:$0xf]
  %v321 = vld [vmem:[%s6 + $0x2c] sm:$0xf]
  %v322 = vld [vmem:[%s6 + $0x30] sm:$0xf]
  %v323 = vld [vmem:[%s6 + $0x34] sm:$0xf]
  %v324 = vld [vmem:[%s6 + $0x38] sm:$0xf]
  %v325 = vld [vmem:[%s6 + $0x3c] sm:$0xf]
  %v326 = vld [vmem:[%s7] sm:$0x1]
  %v328 = vlaneseq
  %v329 = vshrl.u32 %v328, 7
  %v330 = vsub.s32 0, %v329
  %v331 = vrot.slane %v326, %v330
  %v349 = vunpack.c.l.b16 %v310
  %v350 = vunpack.c.l.b16 %v311
  %v351 = vunpack.c.l.b16 %v312
  %v352 = vunpack.c.l.b16 %v313
  %v353 = vunpack.c.l.b16 %v314
  %v354 = vunpack.c.l.b16 %v315
  %v355 = vunpack.c.l.b16 %v316
  %v356 = vunpack.c.l.b16 %v317
  %v357 = vunpack.c.l.b16 %v318
  %v358 = vunpack.c.l.b16 %v319
  %v359 = vunpack.c.l.b16 %v320
  %v360 = vunpack.c.l.b16 %v321
  %v361 = vunpack.c.l.b16 %v322
  %v362 = vunpack.c.l.b16 %v323
  %v363 = vunpack.c.l.b16 %v324
  %v364 = vunpack.c.l.b16 %v325
  %v365 = vpack.c.b16 %v350, %v349
  %v366 = vpack.c.b16 %v352, %v351
  %v367 = vpack.c.b16 %v354, %v353
  %v368 = vpack.c.b16 %v356, %v355
  %v369 = vpack.c.b16 %v358, %v357
  %v370 = vpack.c.b16 %v360, %v359
  %v371 = vpack.c.b16 %v362, %v361
  %v372 = vpack.c.b16 %v364, %v363
  %381 = vmatprep.subr.bf16.mxu0 0
  %382 = vmatpush1.bf16.msra.mxu0 %v372
  %383 = vmatprep.subr.bf16.mxu0 0
  %384 = vmatpush1.bf16.msra.mxu0 %v371
  %385 = vmatprep.subr.bf16.mxu0 0
  %386 = vmatpush1.bf16.msra.mxu0 %v370
  %387 = vmatprep.subr.bf16.mxu0 0
  %388 = vmatpush1.bf16.msra.mxu0 %v369
  %389 = vmatprep.subr.bf16.mxu0 0
  %390 = vmatpush1.bf16.msra.mxu0 %v368
  %391 = vmatprep.subr.bf16.mxu0 0
  %392 = vmatpush1.bf16.msra.mxu0 %v367
  %393 = vmatprep.subr.bf16.mxu0 0
  %394 = vmatpush1.bf16.msra.mxu0 %v366
  %395 = vmatprep.subr.bf16.mxu0 0
  %396 = vmatpush1.bf16.msra.mxu0 %v365
  %397 = vmatprep.subr.bf16.mxu0 0
  %398 = vmatpush2.bf16.msra.mxu0 0
  %399 = vmatprep.subr.bf16.mxu0 0
  %400 = vmatpush2.bf16.msra.mxu0 0
  %401 = vmatprep.subr.bf16.mxu0 0
  %402 = vmatpush2.bf16.msra.mxu0 0
  %403 = vmatprep.subr.bf16.mxu0 0
  %404 = vmatpush2.bf16.msra.mxu0 0
  %405 = vmatprep.subr.bf16.mxu0 0
  %406 = vmatpush2.bf16.msra.mxu0 0
  %407 = vmatprep.subr.bf16.mxu0 0
  %408 = vmatpush2.bf16.msra.mxu0 0
  %409 = vmatprep.subr.bf16.mxu0 0
  %410 = vmatpush2.bf16.msra.mxu0 0
  %411 = vmatprep.subr.bf16.mxu0 0
  %412 = vmatpush2.bf16.msra.mxu0 0
  %413 = vmatprep.mubr.bf16.mxu0 0
  %414 = vmatmul.mubr.bf16.gmra.mxu0 %v309
  %v415 = vpop.f32.mrf.mxu0
  %v416 = vadd.f32 %v331, %v415
  %v417 = vpop.f32.mrf.mxu0
  %v418 = vpop.f32.mrf.mxu0
  %v419 = vadd.f32 %v331, %v418
  %v420 = vpop.f32.mrf.mxu0
  %421 = vdwg.mxu0
  %v422 = vpack.c.bf16 %v419, %v416
  %v423 = vld [vmem:[%s14] sm:$0xf]
  %v424 = vld [vmem:[%s14 + $0x4] sm:$0xf]
  %v425 = vld [vmem:[%s14 + $0x8] sm:$0xf]
  %v426 = vld [vmem:[%s14 + $0xc] sm:$0xf]
  %v427 = vld [vmem:[%s14 + $0x10] sm:$0xf]
  %v428 = vld [vmem:[%s14 + $0x14] sm:$0xf]
  %v429 = vld [vmem:[%s14 + $0x18] sm:$0xf]
  %v430 = vld [vmem:[%s14 + $0x1c] sm:$0xf]
  %v431 = vld [vmem:[%s14 + $0x20] sm:$0xf]
  %v432 = vld [vmem:[%s14 + $0x24] sm:$0xf]
  %v433 = vld [vmem:[%s14 + $0x28] sm:$0xf]
  %v434 = vld [vmem:[%s14 + $0x2c] sm:$0xf]
  %v435 = vld [vmem:[%s14 + $0x30] sm:$0xf]
  %v436 = vld [vmem:[%s14 + $0x34] sm:$0xf]
  %v437 = vld [vmem:[%s14 + $0x38] sm:$0xf]
  %v438 = vld [vmem:[%s14 + $0x3c] sm:$0xf]
  %v439 = vld [vmem:[%s15] sm:$0x1]
  %v441 = vlaneseq
  %v442 = vshrl.u32 %v441, 7
  %v443 = vsub.s32 0, %v442
  %v444 = vrot.slane %v439, %v443
  %v462 = vunpack.c.l.b16 %v423
  %v463 = vunpack.c.l.b16 %v424
  %v464 = vunpack.c.l.b16 %v425
  %v465 = vunpack.c.l.b16 %v426
  %v466 = vunpack.c.l.b16 %v427
  %v467 = vunpack.c.l.b16 %v428
  %v468 = vunpack.c.l.b16 %v429
  %v469 = vunpack.c.l.b16 %v430
  %v470 = vunpack.c.l.b16 %v431
  %v471 = vunpack.c.l.b16 %v432
  %v472 = vunpack.c.l.b16 %v433
  %v473 = vunpack.c.l.b16 %v434
  %v474 = vunpack.c.l.b16 %v435
  %v475 = vunpack.c.l.b16 %v436
  %v476 = vunpack.c.l.b16 %v437
  %v477 = vunpack.c.l.b16 %v438
  %v478 = vpack.c.b16 %v463, %v462
  %v479 = vpack.c.b16 %v465, %v464
  %v480 = vpack.c.b16 %v467, %v466
  %v481 = vpack.c.b16 %v469, %v468
  %v482 = vpack.c.b16 %v471, %v470
  %v483 = vpack.c.b16 %v473, %v472
  %v484 = vpack.c.b16 %v475, %v474
  %v485 = vpack.c.b16 %v477, %v476
  %494 = vmatprep.subr.bf16.mxu0 0
  %495 = vmatpush1.bf16.msra.mxu0 %v485
  %496 = vmatprep.subr.bf16.mxu0 0
  %497 = vmatpush1.bf16.msra.mxu0 %v484
  %498 = vmatprep.subr.bf16.mxu0 0
  %499 = vmatpush1.bf16.msra.mxu0 %v483
  %500 = vmatprep.subr.bf16.mxu0 0
  %501 = vmatpush1.bf16.msra.mxu0 %v482
  %502 = vmatprep.subr.bf16.mxu0 0
  %503 = vmatpush1.bf16.msra.mxu0 %v481
  %504 = vmatprep.subr.bf16.mxu0 0
  %505 = vmatpush1.bf16.msra.mxu0 %v480
  %506 = vmatprep.subr.bf16.mxu0 0
  %507 = vmatpush1.bf16.msra.mxu0 %v479
  %508 = vmatprep.subr.bf16.mxu0 0
  %509 = vmatpush1.bf16.msra.mxu0 %v478
  %510 = vmatprep.subr.bf16.mxu0 0
  %511 = vmatpush2.bf16.msra.mxu0 0
  %512 = vmatprep.subr.bf16.mxu0 0
  %513 = vmatpush2.bf16.msra.mxu0 0
  %514 = vmatprep.subr.bf16.mxu0 0
  %515 = vmatpush2.bf16.msra.mxu0 0
  %516 = vmatprep.subr.bf16.mxu0 0
  %517 = vmatpush2.bf16.msra.mxu0 0
  %518 = vmatprep.subr.bf16.mxu0 0
  %519 = vmatpush2.bf16.msra.mxu0 0
  %520 = vmatprep.subr.bf16.mxu0 0
  %521 = vmatpush2.bf16.msra.mxu0 0
  %522 = vmatprep.subr.bf16.mxu0 0
  %523 = vmatpush2.bf16.msra.mxu0 0
  %524 = vmatprep.subr.bf16.mxu0 0
  %525 = vmatpush2.bf16.msra.mxu0 0
  %526 = vmatprep.mubr.bf16.mxu0 0
  %527 = vmatmul.mubr.bf16.gmra.mxu0 %v422
  %v528 = vpop.f32.mrf.mxu0
  %v529 = vadd.f32 %v444, %v528
  %v530 = vpop.f32.mrf.mxu0
  %v531 = vpop.f32.mrf.mxu0
  %v532 = vadd.f32 %v444, %v531
  %v533 = vpop.f32.mrf.mxu0
  %534 = vdwg.mxu0
  %v535 = vmax.f32 %v529, 0.0
  %v536 = vmax.f32 %v532, 0.0
  %v537 = vpack.c.bf16 %v536, %v535
  %v538 = vld [vmem:[%s16] sm:$0xf]
  %v539 = vld [vmem:[%s16 + $0x4] sm:$0xf]
  %v540 = vld [vmem:[%s16 + $0x8] sm:$0xf]
  %v541 = vld [vmem:[%s16 + $0xc] sm:$0xf]
  %v542 = vld [vmem:[%s16 + $0x10] sm:$0xf]
  %v543 = vld [vmem:[%s16 + $0x14] sm:$0xf]
  %v544 = vld [vmem:[%s16 + $0x18] sm:$0xf]
  %v545 = vld [vmem:[%s16 + $0x1c] sm:$0xf]
  %v546 = vld [vmem:[%s16 + $0x20] sm:$0xf]
  %v547 = vld [vmem:[%s16 + $0x24] sm:$0xf]
  %v548 = vld [vmem:[%s16 + $0x28] sm:$0xf]
  %v549 = vld [vmem:[%s16 + $0x2c] sm:$0xf]
  %v550 = vld [vmem:[%s16 + $0x30] sm:$0xf]
  %v551 = vld [vmem:[%s16 + $0x34] sm:$0xf]
  %v552 = vld [vmem:[%s16 + $0x38] sm:$0xf]
  %v553 = vld [vmem:[%s16 + $0x3c] sm:$0xf]
  %v554 = vld [vmem:[%s17] sm:$0x1]
  %v556 = vlaneseq
  %v557 = vshrl.u32 %v556, 7
  %v558 = vsub.s32 0, %v557
  %v559 = vrot.slane %v554, %v558
  %v577 = vunpack.c.l.b16 %v538
  %v578 = vunpack.c.l.b16 %v539
  %v579 = vunpack.c.l.b16 %v540
  %v580 = vunpack.c.l.b16 %v541
  %v581 = vunpack.c.l.b16 %v542
  %v582 = vunpack.c.l.b16 %v543
  %v583 = vunpack.c.l.b16 %v544
  %v584 = vunpack.c.l.b16 %v545
  %v585 = vunpack.c.l.b16 %v546
  %v586 = vunpack.c.l.b16 %v547
  %v587 = vunpack.c.l.b16 %v548
  %v588 = vunpack.c.l.b16 %v549
  %v589 = vunpack.c.l.b16 %v550
  %v590 = vunpack.c.l.b16 %v551
  %v591 = vunpack.c.l.b16 %v552
  %v592 = vunpack.c.l.b16 %v553
  %v593 = vpack.c.b16 %v578, %v577
  %v594 = vpack.c.b16 %v580, %v579
  %v595 = vpack.c.b16 %v582, %v581
  %v596 = vpack.c.b16 %v584, %v583
  %v597 = vpack.c.b16 %v586, %v585
  %v598 = vpack.c.b16 %v588, %v587
  %v599 = vpack.c.b16 %v590, %v589
  %v600 = vpack.c.b16 %v592, %v591
  %609 = vmatprep.subr.bf16.mxu0 0
  %610 = vmatpush1.bf16.msra.mxu0 %v600
  %611 = vmatprep.subr.bf16.mxu0 0
  %612 = vmatpush1.bf16.msra.mxu0 %v599
  %613 = vmatprep.subr.bf16.mxu0 0
  %614 = vmatpush1.bf16.msra.mxu0 %v598
  %615 = vmatprep.subr.bf16.mxu0 0
  %616 = vmatpush1.bf16.msra.mxu0 %v597
  %617 = vmatprep.subr.bf16.mxu0 0
  %618 = vmatpush1.bf16.msra.mxu0 %v596
  %619 = vmatprep.subr.bf16.mxu0 0
  %620 = vmatpush1.bf16.msra.mxu0 %v595
  %621 = vmatprep.subr.bf16.mxu0 0
  %622 = vmatpush1.bf16.msra.mxu0 %v594
  %623 = vmatprep.subr.bf16.mxu0 0
  %624 = vmatpush1.bf16.msra.mxu0 %v593
  %625 = vmatprep.subr.bf16.mxu0 0
  %626 = vmatpush2.bf16.msra.mxu0 0
  %627 = vmatprep.subr.bf16.mxu0 0
  %628 = vmatpush2.bf16.msra.mxu0 0
  %629 = vmatprep.subr.bf16.mxu0 0
  %630 = vmatpush2.bf16.msra.mxu0 0
  %631 = vmatprep.subr.bf16.mxu0 0
  %632 = vmatpush2.bf16.msra.mxu0 0
  %633 = vmatprep.subr.bf16.mxu0 0
  %634 = vmatpush2.bf16.msra.mxu0 0
  %635 = vmatprep.subr.bf16.mxu0 0
  %636 = vmatpush2.bf16.msra.mxu0 0
  %637 = vmatprep.subr.bf16.mxu0 0
  %638 = vmatpush2.bf16.msra.mxu0 0
  %639 = vmatprep.subr.bf16.mxu0 0
  %640 = vmatpush2.bf16.msra.mxu0 0
  %641 = vmatprep.mubr.bf16.mxu0 0
  %642 = vmatmul.mubr.bf16.gmra.mxu0 %v537
  %v643 = vpop.f32.mrf.mxu0
  %v644 = vadd.f32 %v559, %v643
  %v645 = vpop.f32.mrf.mxu0
  %v646 = vpop.f32.mrf.mxu0
  %v647 = vadd.f32 %v559, %v646
  %v648 = vpop.f32.mrf.mxu0
  %649 = vdwg.mxu0
  %v650 = vmul.f32 %v644, 3.7796447
  %v651 = vmul.f32 %v647, 3.7796447
  %v652 = vpack.c.bf16 %v651, %v650
  %v654 = vunpack.c.l.b16 %v652
  %v655 = vunpack.c.h.b16 %v652
  %v656 = vpack.c.b16 %v654, %v654
  %v657 = vpack.c.b16 %v655, %v655
  %660 = vst [vmem:[%s22] sm:$0xf] %v656
  %661 = vst [vmem:[%s22 + $0x4] sm:$0xf] %v657
  %v662 = vld [vmem:[%s1] sm:$0xf]
  %v663 = vld [vmem:[%s1 + $0x4] sm:$0xf]
  %v664 = vld [vmem:[%s8] sm:$0xf]
  %v665 = vld [vmem:[%s8 + $0x4] sm:$0xf]
  %v666 = vld [vmem:[%s8 + $0x8] sm:$0xf]
  %v667 = vld [vmem:[%s8 + $0xc] sm:$0xf]
  %v668 = vld [vmem:[%s8 + $0x10] sm:$0xf]
  %v669 = vld [vmem:[%s8 + $0x14] sm:$0xf]
  %v670 = vld [vmem:[%s8 + $0x18] sm:$0xf]
  %v671 = vld [vmem:[%s8 + $0x1c] sm:$0xf]
  %v672 = vld [vmem:[%s8 + $0x20] sm:$0xf]
  %v673 = vld [vmem:[%s8 + $0x24] sm:$0xf]
  %v674 = vld [vmem:[%s8 + $0x28] sm:$0xf]
  %v675 = vld [vmem:[%s8 + $0x2c] sm:$0xf]
  %v676 = vld [vmem:[%s8 + $0x30] sm:$0xf]
  %v677 = vld [vmem:[%s8 + $0x34] sm:$0xf]
  %v678 = vld [vmem:[%s8 + $0x38] sm:$0xf]
  %v679 = vld [vmem:[%s8 + $0x3c] sm:$0xf]
  %v680 = vld [vmem:[%s9] sm:$0x1]
  %v682 = vlaneseq
  %v683 = vshrl.u32 %v682, 7
  %v684 = vsub.s32 0, %v683
  %v685 = vrot.slane %v680, %v684
  %v689 = vunpack.c.l.b16 %v662
  %v690 = vunpack.c.l.b16 %v663
  %v691 = vpack.c.b16 %v690, %v689
  %v709 = vunpack.c.l.b16 %v664
  %v710 = vunpack.c.l.b16 %v665
  %v711 = vunpack.c.l.b16 %v666
  %v712 = vunpack.c.l.b16 %v667
  %v713 = vunpack.c.l.b16 %v668
  %v714 = vunpack.c.l.b16 %v669
  %v715 = vunpack.c.l.b16 %v670
  %v716 = vunpack.c.l.b16 %v671
  %v717 = vunpack.c.l.b16 %v672
  %v718 = vunpack.c.l.b16 %v673
  %v719 = vunpack.c.l.b16 %v674
  %v720 = vunpack.c.l.b16 %v675
  %v721 = vunpack.c.l.b16 %v676
  %v722 = vunpack.c.l.b16 %v677
  %v723 = vunpack.c.l.b16 %v678
  %v724 = vunpack.c.l.b16 %v679
  %v725 = vpack.c.b16 %v710, %v709
  %v726 = vpack.c.b16 %v712, %v711
  %v727 = vpack.c.b16 %v714, %v713
  %v728 = vpack.c.b16 %v716, %v715
  %v729 = vpack.c.b16 %v718, %v717
  %v730 = vpack.c.b16 %v720, %v719
  %v731 = vpack.c.b16 %v722, %v721
  %v732 = vpack.c.b16 %v724, %v723
  %741 = vmatprep.subr.bf16.mxu0 0
  %742 = vmatpush1.bf16.msra.mxu0 %v732
  %743 = vmatprep.subr.bf16.mxu0 0
  %744 = vmatpush1.bf16.msra.mxu0 %v731
  %745 = vmatprep.subr.bf16.mxu0 0
  %746 = vmatpush1.bf16.msra.mxu0 %v730
  %747 = vmatprep.subr.bf16.mxu0 0
  %748 = vmatpush1.bf16.msra.mxu0 %v729
  %749 = vmatprep.subr.bf16.mxu0 0
  %750 = vmatpush1.bf16.msra.mxu0 %v728
  %751 = vmatprep.subr.bf16.mxu0 0
  %752 = vmatpush1.bf16.msra.mxu0 %v727
  %753 = vmatprep.subr.bf16.mxu0 0
  %754 = vmatpush1.bf16.msra.mxu0 %v726
  %755 = vmatprep.subr.bf16.mxu0 0
  %756 = vmatpush1.bf16.msra.mxu0 %v725
  %757 = vmatprep.subr.bf16.mxu0 0
  %758 = vmatpush2.bf16.msra.mxu0 0
  %759 = vmatprep.subr.bf16.mxu0 0
  %760 = vmatpush2.bf16.msra.mxu0 0
  %761 = vmatprep.subr.bf16.mxu0 0
  %762 = vmatpush2.bf16.msra.mxu0 0
  %763 = vmatprep.subr.bf16.mxu0 0
  %764 = vmatpush2.bf16.msra.mxu0 0
  %765 = vmatprep.subr.bf16.mxu0 0
  %766 = vmatpush2.bf16.msra.mxu0 0
  %767 = vmatprep.subr.bf16.mxu0 0
  %768 = vmatpush2.bf16.msra.mxu0 0
  %769 = vmatprep.subr.bf16.mxu0 0
  %770 = vmatpush2.bf16.msra.mxu0 0
  %771 = vmatprep.subr.bf16.mxu0 0
  %772 = vmatpush2.bf16.msra.mxu0 0
  %773 = vmatprep.mubr.bf16.mxu0 0
  %774 = vmatmul.mubr.bf16.gmra.mxu0 %v691
  %v775 = vpop.f32.mrf.mxu0
  %v776 = vadd.f32 %v685, %v775
  %v777 = vpop.f32.mrf.mxu0
  %v778 = vpop.f32.mrf.mxu0
  %v779 = vadd.f32 %v685, %v778
  %v780 = vpop.f32.mrf.mxu0
  %781 = vdwg.mxu0
  %v782 = vmax.f32 %v776, 0.0
  %v783 = vmax.f32 %v779, 0.0
  %v784 = vpack.c.bf16 %v783, %v782
  %v785 = vld [vmem:[%s10] sm:$0xf]
  %v786 = vld [vmem:[%s10 + $0x4] sm:$0xf]
  %v787 = vld [vmem:[%s10 + $0x8] sm:$0xf]
  %v788 = vld [vmem:[%s10 + $0xc] sm:$0xf]
  %v789 = vld [vmem:[%s10 + $0x10] sm:$0xf]
  %v790 = vld [vmem:[%s10 + $0x14] sm:$0xf]
  %v791 = vld [vmem:[%s10 + $0x18] sm:$0xf]
  %v792 = vld [vmem:[%s10 + $0x1c] sm:$0xf]
  %v793 = vld [vmem:[%s10 + $0x20] sm:$0xf]
  %v794 = vld [vmem:[%s10 + $0x24] sm:$0xf]
  %v795 = vld [vmem:[%s10 + $0x28] sm:$0xf]
  %v796 = vld [vmem:[%s10 + $0x2c] sm:$0xf]
  %v797 = vld [vmem:[%s10 + $0x30] sm:$0xf]
  %v798 = vld [vmem:[%s10 + $0x34] sm:$0xf]
  %v799 = vld [vmem:[%s10 + $0x38] sm:$0xf]
  %v800 = vld [vmem:[%s10 + $0x3c] sm:$0xf]
  %v801 = vld [vmem:[%s11] sm:$0x1]
  %v803 = vlaneseq
  %v804 = vshrl.u32 %v803, 7
  %v805 = vsub.s32 0, %v804
  %v806 = vrot.slane %v801, %v805
  %v824 = vunpack.c.l.b16 %v785
  %v825 = vunpack.c.l.b16 %v786
  %v826 = vunpack.c.l.b16 %v787
  %v827 = vunpack.c.l.b16 %v788
  %v828 = vunpack.c.l.b16 %v789
  %v829 = vunpack.c.l.b16 %v790
  %v830 = vunpack.c.l.b16 %v791
  %v831 = vunpack.c.l.b16 %v792
  %v832 = vunpack.c.l.b16 %v793
  %v833 = vunpack.c.l.b16 %v794
  %v834 = vunpack.c.l.b16 %v795
  %v835 = vunpack.c.l.b16 %v796
  %v836 = vunpack.c.l.b16 %v797
  %v837 = vunpack.c.l.b16 %v798
  %v838 = vunpack.c.l.b16 %v799
  %v839 = vunpack.c.l.b16 %v800
  %v840 = vpack.c.b16 %v825, %v824
  %v841 = vpack.c.b16 %v827, %v826
  %v842 = vpack.c.b16 %v829, %v828
  %v843 = vpack.c.b16 %v831, %v830
  %v844 = vpack.c.b16 %v833, %v832
  %v845 = vpack.c.b16 %v835, %v834
  %v846 = vpack.c.b16 %v837, %v836
  %v847 = vpack.c.b16 %v839, %v838
  %856 = vmatprep.subr.bf16.mxu0 0
  %857 = vmatpush1.bf16.msra.mxu0 %v847
  %858 = vmatprep.subr.bf16.mxu0 0
  %859 = vmatpush1.bf16.msra.mxu0 %v846
  %860 = vmatprep.subr.bf16.mxu0 0
  %861 = vmatpush1.bf16.msra.mxu0 %v845
  %862 = vmatprep.subr.bf16.mxu0 0
  %863 = vmatpush1.bf16.msra.mxu0 %v844
  %864 = vmatprep.subr.bf16.mxu0 0
  %865 = vmatpush1.bf16.msra.mxu0 %v843
  %866 = vmatprep.subr.bf16.mxu0 0
  %867 = vmatpush1.bf16.msra.mxu0 %v842
  %868 = vmatprep.subr.bf16.mxu0 0
  %869 = vmatpush1.bf16.msra.mxu0 %v841
  %870 = vmatprep.subr.bf16.mxu0 0
  %871 = vmatpush1.bf16.msra.mxu0 %v840
  %872 = vmatprep.subr.bf16.mxu0 0
  %873 = vmatpush2.bf16.msra.mxu0 0
  %874 = vmatprep.subr.bf16.mxu0 0
  %875 = vmatpush2.bf16.msra.mxu0 0
  %876 = vmatprep.subr.bf16.mxu0 0
  %877 = vmatpush2.bf16.msra.mxu0 0
  %878 = vmatprep.subr.bf16.mxu0 0
  %879 = vmatpush2.bf16.msra.mxu0 0
  %880 = vmatprep.subr.bf16.mxu0 0
  %881 = vmatpush2.bf16.msra.mxu0 0
  %882 = vmatprep.subr.bf16.mxu0 0
  %883 = vmatpush2.bf16.msra.mxu0 0
  %884 = vmatprep.subr.bf16.mxu0 0
  %885 = vmatpush2.bf16.msra.mxu0 0
  %886 = vmatprep.subr.bf16.mxu0 0
  %887 = vmatpush2.bf16.msra.mxu0 0
  %888 = vmatprep.mubr.bf16.mxu0 0
  %889 = vmatmul.mubr.bf16.gmra.mxu0 %v784
  %v890 = vpop.f32.mrf.mxu0
  %v891 = vadd.f32 %v806, %v890
  %v892 = vpop.f32.mrf.mxu0
  %v893 = vpop.f32.mrf.mxu0
  %v894 = vadd.f32 %v806, %v893
  %v895 = vpop.f32.mrf.mxu0
  %896 = vdwg.mxu0
  %v897 = vmax.f32 %v891, 0.0
  %v898 = vmax.f32 %v894, 0.0
  %v899 = vpack.c.bf16 %v898, %v897
  %v900 = vld [vmem:[%s12] sm:$0xf]
  %v901 = vld [vmem:[%s12 + $0x4] sm:$0xf]
  %v902 = vld [vmem:[%s12 + $0x8] sm:$0xf]
  %v903 = vld [vmem:[%s12 + $0xc] sm:$0xf]
  %v904 = vld [vmem:[%s12 + $0x10] sm:$0xf]
  %v905 = vld [vmem:[%s12 + $0x14] sm:$0xf]
  %v906 = vld [vmem:[%s12 + $0x18] sm:$0xf]
  %v907 = vld [vmem:[%s12 + $0x1c] sm:$0xf]
  %v908 = vld [vmem:[%s12 + $0x20] sm:$0xf]
  %v909 = vld [vmem:[%s12 + $0x24] sm:$0xf]
  %v910 = vld [vmem:[%s12 + $0x28] sm:$0xf]
  %v911 = vld [vmem:[%s12 + $0x2c] sm:$0xf]
  %v912 = vld [vmem:[%s12 + $0x30] sm:$0xf]
  %v913 = vld [vmem:[%s12 + $0x34] sm:$0xf]
  %v914 = vld [vmem:[%s12 + $0x38] sm:$0xf]
  %v915 = vld [vmem:[%s12 + $0x3c] sm:$0xf]
  %v916 = vld [vmem:[%s13] sm:$0x1]
  %v918 = vlaneseq
  %v919 = vshrl.u32 %v918, 7
  %v920 = vsub.s32 0, %v919
  %v921 = vrot.slane %v916, %v920
  %v939 = vunpack.c.l.b16 %v900
  %v940 = vunpack.c.l.b16 %v901
  %v941 = vunpack.c.l.b16 %v902
  %v942 = vunpack.c.l.b16 %v903
  %v943 = vunpack.c.l.b16 %v904
  %v944 = vunpack.c.l.b16 %v905
  %v945 = vunpack.c.l.b16 %v906
  %v946 = vunpack.c.l.b16 %v907
  %v947 = vunpack.c.l.b16 %v908
  %v948 = vunpack.c.l.b16 %v909
  %v949 = vunpack.c.l.b16 %v910
  %v950 = vunpack.c.l.b16 %v911
  %v951 = vunpack.c.l.b16 %v912
  %v952 = vunpack.c.l.b16 %v913
  %v953 = vunpack.c.l.b16 %v914
  %v954 = vunpack.c.l.b16 %v915
  %v955 = vpack.c.b16 %v940, %v939
  %v956 = vpack.c.b16 %v942, %v941
  %v957 = vpack.c.b16 %v944, %v943
  %v958 = vpack.c.b16 %v946, %v945
  %v959 = vpack.c.b16 %v948, %v947
  %v960 = vpack.c.b16 %v950, %v949
  %v961 = vpack.c.b16 %v952, %v951
  %v962 = vpack.c.b16 %v954, %v953
  %971 = vmatprep.subr.bf16.mxu0 0
  %972 = vmatpush1.bf16.msra.mxu0 %v962
  %973 = vmatprep.subr.bf16.mxu0 0
  %974 = vmatpush1.bf16.msra.mxu0 %v961
  %975 = vmatprep.subr.bf16.mxu0 0
  %976 = vmatpush1.bf16.msra.mxu0 %v960
  %977 = vmatprep.subr.bf16.mxu0 0
  %978 = vmatpush1.bf16.msra.mxu0 %v959
  %979 = vmatprep.subr.bf16.mxu0 0
  %980 = vmatpush1.bf16.msra.mxu0 %v958
  %981 = vmatprep.subr.bf16.mxu0 0
  %982 = vmatpush1.bf16.msra.mxu0 %v957
  %983 = vmatprep.subr.bf16.mxu0 0
  %984 = vmatpush1.bf16.msra.mxu0 %v956
  %985 = vmatprep.subr.bf16.mxu0 0
  %986 = vmatpush1.bf16.msra.mxu0 %v955
  %987 = vmatprep.subr.bf16.mxu0 0
  %988 = vmatpush2.bf16.msra.mxu0 0
  %989 = vmatprep.subr.bf16.mxu0 0
  %990 = vmatpush2.bf16.msra.mxu0 0
  %991 = vmatprep.subr.bf16.mxu0 0
  %992 = vmatpush2.bf16.msra.mxu0 0
  %993 = vmatprep.subr.bf16.mxu0 0
  %994 = vmatpush2.bf16.msra.mxu0 0
  %995 = vmatprep.subr.bf16.mxu0 0
  %996 = vmatpush2.bf16.msra.mxu0 0
  %997 = vmatprep.subr.bf16.mxu0 0
  %998 = vmatpush2.bf16.msra.mxu0 0
  %999 = vmatprep.subr.bf16.mxu0 0
  %1000 = vmatpush2.bf16.msra.mxu0 0
  %1001 = vmatprep.subr.bf16.mxu0 0
  %1002 = vmatpush2.bf16.msra.mxu0 0
  %1003 = vmatprep.mubr.bf16.mxu0 0
  %1004 = vmatmul.mubr.bf16.gmra.mxu0 %v899
  %v1005 = vpop.f32.mrf.mxu0
  %v1006 = vadd.f32 %v921, %v1005
  %v1007 = vpop.f32.mrf.mxu0
  %v1008 = vpop.f32.mrf.mxu0
  %v1009 = vadd.f32 %v921, %v1008
  %v1010 = vpop.f32.mrf.mxu0
  %1011 = vdwg.mxu0
  %v1012 = vpack.c.bf16 %v1009, %v1006
  %v1013 = vld [vmem:[%s18] sm:$0xf]
  %v1014 = vld [vmem:[%s18 + $0x4] sm:$0xf]
  %v1015 = vld [vmem:[%s18 + $0x8] sm:$0xf]
  %v1016 = vld [vmem:[%s18 + $0xc] sm:$0xf]
  %v1017 = vld [vmem:[%s18 + $0x10] sm:$0xf]
  %v1018 = vld [vmem:[%s18 + $0x14] sm:$0xf]
  %v1019 = vld [vmem:[%s18 + $0x18] sm:$0xf]
  %v1020 = vld [vmem:[%s18 + $0x1c] sm:$0xf]
  %v1021 = vld [vmem:[%s18 + $0x20] sm:$0xf]
  %v1022 = vld [vmem:[%s18 + $0x24] sm:$0xf]
  %v1023 = vld [vmem:[%s18 + $0x28] sm:$0xf]
  %v1024 = vld [vmem:[%s18 + $0x2c] sm:$0xf]
  %v1025 = vld [vmem:[%s18 + $0x30] sm:$0xf]
  %v1026 = vld [vmem:[%s18 + $0x34] sm:$0xf]
  %v1027 = vld [vmem:[%s18 + $0x38] sm:$0xf]
  %v1028 = vld [vmem:[%s18 + $0x3c] sm:$0xf]
  %v1029 = vld [vmem:[%s19] sm:$0x1]
  %v1031 = vlaneseq
  %v1032 = vshrl.u32 %v1031, 7
  %v1033 = vsub.s32 0, %v1032
  %v1034 = vrot.slane %v1029, %v1033
  %v1052 = vunpack.c.l.b16 %v1013
  %v1053 = vunpack.c.l.b16 %v1014
  %v1054 = vunpack.c.l.b16 %v1015
  %v1055 = vunpack.c.l.b16 %v1016
  %v1056 = vunpack.c.l.b16 %v1017
  %v1057 = vunpack.c.l.b16 %v1018
  %v1058 = vunpack.c.l.b16 %v1019
  %v1059 = vunpack.c.l.b16 %v1020
  %v1060 = vunpack.c.l.b16 %v1021
  %v1061 = vunpack.c.l.b16 %v1022
  %v1062 = vunpack.c.l.b16 %v1023
  %v1063 = vunpack.c.l.b16 %v1024
  %v1064 = vunpack.c.l.b16 %v1025
  %v1065 = vunpack.c.l.b16 %v1026
  %v1066 = vunpack.c.l.b16 %v1027
  %v1067 = vunpack.c.l.b16 %v1028
  %v1068 = vpack.c.b16 %v1053, %v1052
  %v1069 = vpack.c.b16 %v1055, %v1054
  %v1070 = vpack.c.b16 %v1057, %v1056
  %v1071 = vpack.c.b16 %v1059, %v1058
  %v1072 = vpack.c.b16 %v1061, %v1060
  %v1073 = vpack.c.b16 %v1063, %v1062
  %v1074 = vpack.c.b16 %v1065, %v1064
  %v1075 = vpack.c.b16 %v1067, %v1066
  %1084 = vmatprep.subr.bf16.mxu0 0
  %1085 = vmatpush1.bf16.msra.mxu0 %v1075
  %1086 = vmatprep.subr.bf16.mxu0 0
  %1087 = vmatpush1.bf16.msra.mxu0 %v1074
  %1088 = vmatprep.subr.bf16.mxu0 0
  %1089 = vmatpush1.bf16.msra.mxu0 %v1073
  %1090 = vmatprep.subr.bf16.mxu0 0
  %1091 = vmatpush1.bf16.msra.mxu0 %v1072
  %1092 = vmatprep.subr.bf16.mxu0 0
  %1093 = vmatpush1.bf16.msra.mxu0 %v1071
  %1094 = vmatprep.subr.bf16.mxu0 0
  %1095 = vmatpush1.bf16.msra.mxu0 %v1070
  %1096 = vmatprep.subr.bf16.mxu0 0
  %1097 = vmatpush1.bf16.msra.mxu0 %v1069
  %1098 = vmatprep.subr.bf16.mxu0 0
  %1099 = vmatpush1.bf16.msra.mxu0 %v1068
  %1100 = vmatprep.subr.bf16.mxu0 0
  %1101 = vmatpush2.bf16.msra.mxu0 0
  %1102 = vmatprep.subr.bf16.mxu0 0
  %1103 = vmatpush2.bf16.msra.mxu0 0
  %1104 = vmatprep.subr.bf16.mxu0 0
  %1105 = vmatpush2.bf16.msra.mxu0 0
  %1106 = vmatprep.subr.bf16.mxu0 0
  %1107 = vmatpush2.bf16.msra.mxu0 0
  %1108 = vmatprep.subr.bf16.mxu0 0
  %1109 = vmatpush2.bf16.msra.mxu0 0
  %1110 = vmatprep.subr.bf16.mxu0 0
  %1111 = vmatpush2.bf16.msra.mxu0 0
  %1112 = vmatprep.subr.bf16.mxu0 0
  %1113 = vmatpush2.bf16.msra.mxu0 0
  %1114 = vmatprep.subr.bf16.mxu0 0
  %1115 = vmatpush2.bf16.msra.mxu0 0
  %1116 = vmatprep.mubr.bf16.mxu0 0
  %1117 = vmatmul.mubr.bf16.gmra.mxu0 %v1012
  %v1118 = vpop.f32.mrf.mxu0
  %v1119 = vadd.f32 %v1034, %v1118
  %v1120 = vpop.f32.mrf.mxu0
  %v1121 = vpop.f32.mrf.mxu0
  %v1122 = vadd.f32 %v1034, %v1121
  %v1123 = vpop.f32.mrf.mxu0
  %1124 = vdwg.mxu0
  %v1125 = vmax.f32 %v1119, 0.0
  %v1126 = vmax.f32 %v1122, 0.0
  %v1127 = vpack.c.bf16 %v1126, %v1125
  %v1128 = vld [vmem:[%s20] sm:$0xf]
  %v1129 = vld [vmem:[%s20 + $0x4] sm:$0xf]
  %v1130 = vld [vmem:[%s20 + $0x8] sm:$0xf]
  %v1131 = vld [vmem:[%s20 + $0xc] sm:$0xf]
  %v1132 = vld [vmem:[%s20 + $0x10] sm:$0xf]
  %v1133 = vld [vmem:[%s20 + $0x14] sm:$0xf]
  %v1134 = vld [vmem:[%s20 + $0x18] sm:$0xf]
  %v1135 = vld [vmem:[%s20 + $0x1c] sm:$0xf]
  %v1136 = vld [vmem:[%s20 + $0x20] sm:$0xf]
  %v1137 = vld [vmem:[%s20 + $0x24] sm:$0xf]
  %v1138 = vld [vmem:[%s20 + $0x28] sm:$0xf]
  %v1139 = vld [vmem:[%s20 + $0x2c] sm:$0xf]
  %v1140 = vld [vmem:[%s20 + $0x30] sm:$0xf]
  %v1141 = vld [vmem:[%s20 + $0x34] sm:$0xf]
  %v1142 = vld [vmem:[%s20 + $0x38] sm:$0xf]
  %v1143 = vld [vmem:[%s20 + $0x3c] sm:$0xf]
  %v1144 = vld [vmem:[%s21] sm:$0x1]
  %v1146 = vlaneseq
  %v1147 = vshrl.u32 %v1146, 7
  %v1148 = vsub.s32 0, %v1147
  %v1149 = vrot.slane %v1144, %v1148
  %v1167 = vunpack.c.l.b16 %v1128
  %v1168 = vunpack.c.l.b16 %v1129
  %v1169 = vunpack.c.l.b16 %v1130
  %v1170 = vunpack.c.l.b16 %v1131
  %v1171 = vunpack.c.l.b16 %v1132
  %v1172 = vunpack.c.l.b16 %v1133
  %v1173 = vunpack.c.l.b16 %v1134
  %v1174 = vunpack.c.l.b16 %v1135
  %v1175 = vunpack.c.l.b16 %v1136
  %v1176 = vunpack.c.l.b16 %v1137
  %v1177 = vunpack.c.l.b16 %v1138
  %v1178 = vunpack.c.l.b16 %v1139
  %v1179 = vunpack.c.l.b16 %v1140
  %v1180 = vunpack.c.l.b16 %v1141
  %v1181 = vunpack.c.l.b16 %v1142
  %v1182 = vunpack.c.l.b16 %v1143
  %v1183 = vpack.c.b16 %v1168, %v1167
  %v1184 = vpack.c.b16 %v1170, %v1169
  %v1185 = vpack.c.b16 %v1172, %v1171
  %v1186 = vpack.c.b16 %v1174, %v1173
  %v1187 = vpack.c.b16 %v1176, %v1175
  %v1188 = vpack.c.b16 %v1178, %v1177
  %v1189 = vpack.c.b16 %v1180, %v1179
  %v1190 = vpack.c.b16 %v1182, %v1181
  %1199 = vmatprep.subr.bf16.mxu0 0
  %1200 = vmatpush1.bf16.msra.mxu0 %v1190
  %1201 = vmatprep.subr.bf16.mxu0 0
  %1202 = vmatpush1.bf16.msra.mxu0 %v1189
  %1203 = vmatprep.subr.bf16.mxu0 0
  %1204 = vmatpush1.bf16.msra.mxu0 %v1188
  %1205 = vmatprep.subr.bf16.mxu0 0
  %1206 = vmatpush1.bf16.msra.mxu0 %v1187
  %1207 = vmatprep.subr.bf16.mxu0 0
  %1208 = vmatpush1.bf16.msra.mxu0 %v1186
  %1209 = vmatprep.subr.bf16.mxu0 0
  %1210 = vmatpush1.bf16.msra.mxu0 %v1185
  %1211 = vmatprep.subr.bf16.mxu0 0
  %1212 = vmatpush1.bf16.msra.mxu0 %v1184
  %1213 = vmatprep.subr.bf16.mxu0 0
  %1214 = vmatpush1.bf16.msra.mxu0 %v1183
  %1215 = vmatprep.subr.bf16.mxu0 0
  %1216 = vmatpush2.bf16.msra.mxu0 0
  %1217 = vmatprep.subr.bf16.mxu0 0
  %1218 = vmatpush2.bf16.msra.mxu0 0
  %1219 = vmatprep.subr.bf16.mxu0 0
  %1220 = vmatpush2.bf16.msra.mxu0 0
  %1221 = vmatprep.subr.bf16.mxu0 0
  %1222 = vmatpush2.bf16.msra.mxu0 0
  %1223 = vmatprep.subr.bf16.mxu0 0
  %1224 = vmatpush2.bf16.msra.mxu0 0
  %1225 = vmatprep.subr.bf16.mxu0 0
  %1226 = vmatpush2.bf16.msra.mxu0 0
  %1227 = vmatprep.subr.bf16.mxu0 0
  %1228 = vmatpush2.bf16.msra.mxu0 0
  %1229 = vmatprep.subr.bf16.mxu0 0
  %1230 = vmatpush2.bf16.msra.mxu0 0
  %1231 = vmatprep.mubr.bf16.mxu0 0
  %1232 = vmatmul.mubr.bf16.gmra.mxu0 %v1127
  %v1233 = vpop.f32.mrf.mxu0
  %v1234 = vadd.f32 %v1149, %v1233
  %v1235 = vpop.f32.mrf.mxu0
  %v1236 = vpop.f32.mrf.mxu0
  %v1237 = vadd.f32 %v1149, %v1236
  %v1238 = vpop.f32.mrf.mxu0
  %1239 = vdwg.mxu0
  %v1240 = vmul.f32 %v1234, 3.7796447
  %v1241 = vmul.f32 %v1237, 3.7796447
  %v1242 = vpack.c.bf16 %v1241, %v1240
  %v1244 = vunpack.c.l.b16 %v1242
  %v1245 = vunpack.c.h.b16 %v1242
  %v1246 = vpack.c.b16 %v1244, %v1244
  %v1247 = vpack.c.b16 %v1245, %v1245
  %s1250 = scalar_lea.vmem %s22, 8
  %1251 = vst [vmem:[%s1250] sm:$0xf] %v1246
  %1252 = vst [vmem:[%s1250 + $0x4] sm:$0xf] %v1247
  // Predicated region
  $region90: #{_supcon_forward.2} parent=0 // pred_check
    _
  $region91: #{_supcon_forward.2} parent=0 // pred_check_branch
    %1254 = sbr.rel (0) target = $region93
  $region92: #{_supcon_forward.2} parent=0 // pred_region
    _
  $region93: #{_supcon_forward.2} parent=0 // pred_fallthru
    _
  // Predicated region
  $region94: #{_supcon_forward.2} parent=0 // pred_check
    _
  $region95: #{_supcon_forward.2} parent=0 // pred_check_branch
    %1256 = sbr.rel (0) target = $region97
  $region96: #{_supcon_forward.2} parent=0 // pred_region
    _
  $region97: #{_supcon_forward.2} parent=0 // pred_fallthru
    _

</llo_original>
